<compile_context>
chip_gen: v6e
topology: v6e:2x2x1
jax: 0.10.0
libtpu: 0.0.40
codegen_flags: <defaults>
</compile_context>

<pallas_src>
import jax
import jax.numpy as jnp
from jax.experimental import pallas as pl
from jax.experimental.pallas import tpu as pltpu

LANE = 128
_MIB = 1024 * 1024


# --------------------------------------------------------------------------
# Kernels
# --------------------------------------------------------------------------
def _segsum_kernel(idx_ref, gid_ref, x_ref,
                   w_in_ref, b_in_ref, w_h1_ref, b_h1_ref,
                   part_ref):
    """Per-element 2-layer MLP + one-hot segment sum into a resident block."""
    cd = w_in_ref.dtype                       # MXU operand dtype (bf16 or f32)
    k = pl.program_id(1)

    @pl.when(k == 0)
    def _init():
        part_ref[...] = jnp.zeros_like(part_ref)

    # per-element MLP (f32 accumulation, cd operands on the MXU)
    h = jnp.dot(x_ref[...], w_in_ref[...], preferred_element_type=jnp.float32)
    h = jnp.maximum(h + b_in_ref[...], 0.0)                  # [T, H_P] f32
    h = jnp.dot(h.astype(cd), w_h1_ref[...], preferred_element_type=jnp.float32)
    h = jnp.maximum(h + b_h1_ref[...], 0.0)                  # [T, H_P] f32

    # one-hot segment sum on the MXU: padded rows carry idx == G_P and are
    # dropped; indices >= num_groups are likewise silently dropped (matches
    # jax segment_sum drop semantics).
    one_hot = (gid_ref[...] == idx_ref[...]).astype(cd)      # [G_P,1]==[1,T] -> [G_P,T]
    part_ref[...] += jnp.dot(one_hot, h.astype(cd),
                             preferred_element_type=jnp.float32)


def _epilogue_kernel(part_ref, inv_ref, w_out_ref, b_out_ref, o_ref):
    """Combine per-shard partials, mean, ReLU, output linear."""
    cd = w_out_ref.dtype
    sums = jnp.sum(part_ref[...], axis=0)                    # [G_P, H_P] f32
    mean = sums * inv_ref[...]                                # * [G_P, 1]
    # NOTE: `self.hidden2(x)` in the torch forward is computed but never
    # assigned, so it is intentionally omitted here.
    m = jnp.maximum(mean, 0.0).astype(cd)
    out = jnp.dot(m, w_out_ref[...], preferred_element_type=jnp.float32)
    o_ref[...] = (out + b_out_ref[...]).astype(o_ref.dtype)


# --------------------------------------------------------------------------
# Sizing helpers
# --------------------------------------------------------------------------
def _round_up(v, m):
    return ((v + m - 1) // m) * m


def _pad2(a, rows, cols):
    a = jnp.asarray(a, jnp.float32)
    return jnp.pad(a, ((0, rows - a.shape[0]), (0, cols - a.shape[1])))


def _vmem_capacity_bytes():
    try:
        return int(pltpu.get_tpu_info().vmem_capacity_bytes)
    except Exception:
        return 64 * _MIB  # v7x floor — smallest across v5e/v6e/v7x


def _tile_budget(c_in_p, h_p, g_p, cd_bytes):
    """(tile-independent bytes, bytes per tile row) of kernel-1 VMEM use."""
    base = (c_in_p * h_p + h_p * h_p) * cd_bytes + 2 * h_p * 4  # w_in,w_h1,b_in,b_h1 (1 buf)
    base += g_p * 4                                             # group-id column
    base += 2 * g_p * h_p * 4                                   # partial-sum block (2 bufs)
    per_row = 2 * c_in_p * cd_bytes                             # x (double-buffered)
    per_row += 2 * 4                                            # idx row (double-buffered)
    per_row += h_p * (4 + cd_bytes)                             # h f32 + cd cast copy
    per_row += g_p * cd_bytes                                   # one-hot tile
    return base, per_row


def _auto_tile_n(c_in_p, h_p, g_p, cd_bytes, vmem_budget):
    base, per_row = _tile_budget(c_in_p, h_p, g_p, cd_bytes)
    avail = max(vmem_budget - base, 0)
    t = (avail // max(per_row, 1)) // 512 * 512
    return int(max(512, min(2048, t)))


# --------------------------------------------------------------------------
# Wrapper
# --------------------------------------------------------------------------
def deepset_aggregator(x, index, params, num_groups, *,
                       tile_n=None, num_shards=None,
                       compute_dtype=jnp.bfloat16):
    """x: [N, C_in] f32, index: [N] int -> [num_groups, C_out] f32.

    compute_dtype=bfloat16 (default; right choice on v5e): bf16 MXU operands,
    f32 accumulation. compute_dtype=float32: exact-parity validation path.
    num_shards=None auto-selects 2 when there are >=2 row tiles (uses both
    TensorCores on v7x; near-free on single-TC chips).
    """
    n, c_in = x.shape
    hdim = params["w_in"].shape[1]
    c_out = params["w_out"].shape[1]
    cd_bytes = jnp.dtype(compute_dtype).itemsize

    c_in_p = _round_up(c_in, LANE)
    h_p = _round_up(hdim, LANE)
    c_out_p = _round_up(c_out, LANE)
    g_p = _round_up(max(num_groups, 1), 8)

    vmem_cap = _vmem_capacity_bytes()
    vmem_budget = int(vmem_cap * 0.6)
    vmem_limit = min(int(vmem_cap * 0.85), 128 * _MIB)

    if tile_n is None:
        tile_n = _auto_tile_n(c_in_p, h_p, g_p, cd_bytes, vmem_budget)
    # never pad a tiny problem up to 512 rows; keep a multiple of 128 lanes
    tile_n = max(LANE, min(_round_up(tile_n, LANE), _round_up(n, LANE)))

    total_tiles = max(1, -(-n // tile_n))
    if num_shards is None:
        num_shards = min(2, total_tiles)
    num_shards = max(1, min(int(num_shards), total_tiles))
    k_tiles = -(-total_tiles // num_shards)
    n_p = num_shards * k_tiles * tile_n

    # ---- pad & cast operands (zero padding contributes nothing) ------------
    x_p = _pad2(x, n_p, c_in_p).astype(compute_dtype)
    idx_p = jnp.full((1, n_p), g_p, dtype=jnp.int32)          # pad id == G_P -> dropped
    idx_p = idx_p.at[0, :n].set(index.astype(jnp.int32))
    gid = jnp.arange(g_p, dtype=jnp.int32).reshape(g_p, 1)    # resident group-id column

    counts = jnp.zeros((g_p,), jnp.float32).at[index.astype(jnp.int32)].add(1.0)
    inv_counts = (1.0 / jnp.maximum(counts, 1.0)).reshape(g_p, 1)

    w_in = _pad2(params["w_in"], c_in_p, h_p).astype(compute_dtype)
    b_in = _pad2(params["b_in"].reshape(1, -1), 1, h_p)
    w_h1 = _pad2(params["w_h1"], h_p, h_p).astype(compute_dtype)
    b_h1 = _pad2(params["b_h1"].reshape(1, -1), 1, h_p)
    w_out = _pad2(params["w_out"], h_p, c_out_p).astype(compute_dtype)
    b_out = _pad2(params["b_out"].reshape(1, -1), 1, c_out_p)

    flops = 2 * n_p * h_p * (c_in_p + h_p + g_p)
    bytes_accessed = (x_p.size * cd_bytes + idx_p.size * 4
                      + (w_in.size + w_h1.size) * cd_bytes
                      + (b_in.size + b_h1.size) * 4
                      + num_shards * g_p * h_p * 4)

    # ---- kernel 1: sharded segment sums ------------------------------------
    def run_accum(single_buffer):
        def res(arr):
            kw = {"pipeline_mode": pl.Buffered(1)} if single_buffer else {}
            return pl.BlockSpec(arr.shape, lambda s, k: (0,) * arr.ndim, **kw)

        return pl.pallas_call(
            _segsum_kernel,
            out_shape=jax.ShapeDtypeStruct((num_shards, g_p, h_p), jnp.float32),
            grid=(num_shards, k_tiles),
            in_specs=[
                pl.BlockSpec((1, tile_n), lambda s, k: (0, s * k_tiles + k)),
                res(gid),
                pl.BlockSpec((tile_n, c_in_p), lambda s, k: (s * k_tiles + k, 0)),
                res(w_in), res(b_in),
                res(w_h1), res(b_h1),
            ],
            out_specs=pl.BlockSpec((None, g_p, h_p), lambda s, k: (s, 0, 0)),
            compiler_params=pltpu.CompilerParams(
                dimension_semantics=("parallel", "arbitrary"),
                vmem_limit_bytes=vmem_limit),
            cost_estimate=pl.CostEstimate(flops=int(flops), transcendentals=0,
                                          bytes_accessed=int(bytes_accessed)),
        )(idx_p, gid, x_p, w_in, b_in, w_h1, b_h1)

    try:
        partials = run_accum(True)          # single-buffered resident weights
    except Exception:
        # pipeline_mode=pl.Buffered(1) unsupported on this jax build -> default buffering
        partials = run_accum(False)

    # ---- kernel 2: combine shards, mean, relu, output linear ---------------
    out_p = pl.pallas_call(
        _epilogue_kernel,
        out_shape=jax.ShapeDtypeStruct((g_p, c_out_p), jnp.float32),
        grid=(1,),
        in_specs=[
            pl.BlockSpec((num_shards, g_p, h_p), lambda i: (0, 0, 0)),
            pl.BlockSpec((g_p, 1), lambda i: (0, 0)),
            pl.BlockSpec((h_p, c_out_p), lambda i: (0, 0)),
            pl.BlockSpec((1, c_out_p), lambda i: (0, 0)),
        ],
        out_specs=pl.BlockSpec((g_p, c_out_p), lambda i: (0, 0)),
        compiler_params=pltpu.CompilerParams(
            dimension_semantics=("arbitrary",),
            vmem_limit_bytes=vmem_limit),
    )(partials, inv_counts, w_out, b_out)

    return out_p[:num_groups, :c_out]


# --------------------------------------------------------------------------
# Params + pure-JAX reference
# --------------------------------------------------------------------------
def init_params(key, in_channels, hidden_channels, out_channels):
    """torch.nn.Linear-style init; weights stored [fan_in, fan_out]."""
    ks = jax.random.split(key, 8)

    def linear(kw, kb, fan_in, fan_out):
        bound = 1.0 / jnp.sqrt(jnp.float32(fan_in))
        w = jax.random.uniform(kw, (fan_in, fan_out), jnp.float32, -bound, bound)
        b = jax.random.uniform(kb, (fan_out,), jnp.float32, -bound, bound)
        return w, b

    w_in, b_in = linear(ks[0], ks[1], in_channels, hidden_channels)
    w_h1, b_h1 = linear(ks[2], ks[3], hidden_channels, hidden_channels)
    # hidden2 exists in the module but its forward result is discarded;
    # parameters kept for shape fidelity, unused by the kernel.
    w_h2, b_h2 = linear(ks[4], ks[5], hidden_channels, hidden_channels)
    w_out, b_out = linear(ks[6], ks[7], hidden_channels, out_channels)
    return {
        "w_in": w_in, "b_in": b_in,
        "w_h1": w_h1, "b_h1": b_h1,
        "w_h2": w_h2, "b_h2": b_h2,   # unused (matches discarded hidden2 call)
        "w_out": w_out, "b_out": b_out,
    }


def reference_forward(x, index, params, num_groups, compute_dtype=jnp.float32):
    """Pure-JAX reference mirroring the kernel's matmul operand dtype."""
    cd = compute_dtype

    def mm(a, b):
        return jnp.dot(a.astype(cd), b.astype(cd),
                       preferred_element_type=jnp.float32)

    h = jnp.maximum(mm(x, params["w_in"]) + params["b_in"], 0.0)
    h = jnp.maximum(mm(h, params["w_h1"]) + params["b_h1"], 0.0)
    one_hot = (jnp.arange(num_groups)[:, None] == index[None, :]).astype(jnp.float32)
    sums = mm(one_hot, h)
    counts = one_hot.sum(axis=1, keepdims=True)
    mean = sums * (1.0 / jnp.maximum(counts, 1.0))
    m = jnp.maximum(mean, 0.0)
    return mm(m, params["w_out"]) + params["b_out"]


# --------------------------------------------------------------------------
# Demo / self-check
# --------------------------------------------------------------------------
if __name__ == "__main__":
    key = jax.random.PRNGKey(0)
    k_x, k_p, k_x2, k_i2 = jax.random.split(key, 4)

    # Small shapes: 8 set elements, 4 input features, 32 hidden, 8 output,
    # grouped into 4 segments of 2 elements each.
    N, C_IN, H, C_OUT = 8, 4, 32, 8
    x = jax.random.normal(k_x, (N, C_IN), dtype=jnp.float32)
    index = jnp.array([0, 0, 1, 1, 2, 2, 3, 3], dtype=jnp.int32)
    num_groups = int(index.max()) + 1
    params = init_params(k_p, C_IN, H, C_OUT)

    # Fast path (default): bf16 MXU operands, f32 accumulation.
    out_bf16 = jax.block_until_ready(
        deepset_aggregator(x, index, params, num_groups,
                           compute_dtype=jnp.bfloat16))
    ref_bf16 = reference_forward(x, index, params, num_groups,
                                 compute_dtype=jnp.bfloat16)
    assert out_bf16.shape == (num_groups, C_OUT)
    assert jnp.allclose(out_bf16, ref_bf16, atol=1e-2, rtol=1e-2), \
        "bf16 kernel mismatch vs bf16 reference"

    # Exact-semantics path: f32 end to end (validation only; slower on v5e).
    out_f32 = jax.block_until_ready(
        deepset_aggregator(x, index, params, num_groups,
                           compute_dtype=jnp.float32))
    ref_f32 = reference_forward(x, index, params, num_groups,
                                compute_dtype=jnp.float32)
    assert jnp.allclose(out_f32, ref_f32, atol=1e-3, rtol=1e-3), \
        "f32 kernel mismatch vs f32 reference"

    # Exercise the sharded (dual-TensorCore style) path: 2 shards x 2 tiles.
    N2 = 300
    x2 = jax.random.normal(k_x2, (N2, C_IN), dtype=jnp.float32)
    index2 = jax.random.randint(k_i2, (N2,), 0, 5, dtype=jnp.int32)
    num_groups2 = int(index2.max()) + 1
    out_sh = jax.block_until_ready(
        deepset_aggregator(x2, index2, params, num_groups2,
                           tile_n=128, num_shards=2,
                           compute_dtype=jnp.bfloat16))
    ref_sh = reference_forward(x2, index2, params, num_groups2,
                               compute_dtype=jnp.bfloat16)
    assert out_sh.shape == (num_groups2, C_OUT)
    assert jnp.allclose(out_sh, ref_sh, atol=2e-2, rtol=2e-2), \
        "sharded kernel mismatch vs reference"

    print("KERNEL_OK")
</pallas_src>

<mosaic_0001>
module attributes {stable_mosaic.version = 11 : i64} {
  func.func @_segsum_kernel(%arg0: i32, %arg1: i32, %arg2: memref<1x128xi32, #tpu.memory_space<vmem>>, %arg3: memref<8x1xi32, #tpu.memory_space<vmem>>, %arg4: memref<128x128xbf16, #tpu.memory_space<vmem>>, %arg5: memref<128x128xbf16, #tpu.memory_space<vmem>>, %arg6: memref<1x128xf32, #tpu.memory_space<vmem>>, %arg7: memref<128x128xbf16, #tpu.memory_space<vmem>>, %arg8: memref<1x128xf32, #tpu.memory_space<vmem>>, %arg9: memref<1x8x128xf32, #tpu.memory_space<vmem>>) attributes {dimension_semantics = [#tpu.dimension_semantics<parallel>, #tpu.dimension_semantics<arbitrary>], iteration_bounds = array<i64: 1, 1>, scalar_prefetch = 0 : i64, scratch_operands = 0 : i64, tpu.core_type = #tpu.core_type<tc>, window_params = [{transform_indices = @transform_0, window_bounds = array<i64: 1, 128>}, {pipeline_mode = #tpu.pipeline_mode<synchronous>, transform_indices = @transform_1, window_bounds = array<i64: 8, 1>}, {transform_indices = @transform_2, window_bounds = array<i64: 128, 128>}, {pipeline_mode = #tpu.pipeline_mode<synchronous>, transform_indices = @transform_3, window_bounds = array<i64: 128, 128>}, {pipeline_mode = #tpu.pipeline_mode<synchronous>, transform_indices = @transform_4, window_bounds = array<i64: 1, 128>}, {pipeline_mode = #tpu.pipeline_mode<synchronous>, transform_indices = @transform_5, window_bounds = array<i64: 128, 128>}, {pipeline_mode = #tpu.pipeline_mode<synchronous>, transform_indices = @transform_6, window_bounds = array<i64: 1, 128>}, {transform_indices = @transform_7, window_bounds = array<i64: 1, 8, 128>}]} {
    %c0_i32 = arith.constant 0 : i32
    %0 = arith.cmpi eq, %arg1, %c0_i32 : i32
    %1 = arith.extui %0 : i1 to i32
    %c0_i32_0 = arith.constant 0 : i32
    %2 = arith.cmpi ne, %1, %c0_i32_0 : i32
    scf.if %2 {
      %cst_24 = arith.constant 0.000000e+00 : f32
      %35 = vector.broadcast %cst_24 : f32 to vector<8x128xf32>
      %c0_25 = arith.constant 0 : index
      %c0_26 = arith.constant 0 : index
      %c0_27 = arith.constant 0 : index
      %36 = vector.load %arg9[%c0_25, %c0_26, %c0_27] : memref<1x8x128xf32, #tpu.memory_space<vmem>>, vector<1x8x128xf32>
      %37 = vector.shape_cast %36 : vector<1x8x128xf32> to vector<8x128xf32>
      %38 = vector.shape_cast %35 : vector<8x128xf32> to vector<1x8x128xf32>
      tpu.vector_store %arg9[%c0_25, %c0_26, %c0_27], %38 {strides = array<i32>} : memref<1x8x128xf32, #tpu.memory_space<vmem>>, vector<1x8x128xf32>,
    } else {
    }
    %c0 = arith.constant 0 : index
    %c0_1 = arith.constant 0 : index
    %3 = vector.load %arg4[%c0, %c0_1] : memref<128x128xbf16, #tpu.memory_space<vmem>>, vector<128x128xbf16>
    %c0_2 = arith.constant 0 : index
    %c0_3 = arith.constant 0 : index
    %4 = vector.load %arg5[%c0_2, %c0_3] : memref<128x128xbf16, #tpu.memory_space<vmem>>, vector<128x128xbf16>
    %cst = arith.constant dense<0.000000e+00> : vector<128x128xf32>
    %5 = tpu.matmul %3, %4, %cst {dimension_numbers = #tpu.dot_dimension_numbers<[1], [0], [0], [1], [0, 0, 1, 1], [], []>} : vector<128x128xbf16>, vector<128x128xbf16>, vector<128x128xf32> -> vector<128x128xf32>
    %c0_4 = arith.constant 0 : index
    %c0_5 = arith.constant 0 : index
    %6 = vector.load %arg6[%c0_4, %c0_5] : memref<1x128xf32, #tpu.memory_space<vmem>>, vector<1x128xf32>
    %7 = vector.broadcast %6 : vector<1x128xf32> to vector<128x128xf32>
    %8 = arith.addf %5, %7 : vector<128x128xf32>
    %cst_6 = arith.constant 0.000000e+00 : f32
    %9 = vector.broadcast %cst_6 : f32 to vector<128x128xf32>
    %10 = arith.maximumf %8, %9 : vector<128x128xf32>
    %11 = arith.truncf %10 : vector<128x128xf32> to vector<128x128xbf16>
    %c0_7 = arith.constant 0 : index
    %c0_8 = arith.constant 0 : index
    %12 = vector.load %arg7[%c0_7, %c0_8] : memref<128x128xbf16, #tpu.memory_space<vmem>>, vector<128x128xbf16>
    %cst_9 = arith.constant dense<0.000000e+00> : vector<128x128xf32>
    %13 = tpu.matmul %11, %12, %cst_9 {dimension_numbers = #tpu.dot_dimension_numbers<[1], [0], [0], [1], [0, 0, 1, 1], [], []>} : vector<128x128xbf16>, vector<128x128xbf16>, vector<128x128xf32> -> vector<128x128xf32>
    %c0_10 = arith.constant 0 : index
    %c0_11 = arith.constant 0 : index
    %14 = vector.load %arg8[%c0_10, %c0_11] : memref<1x128xf32, #tpu.memory_space<vmem>>, vector<1x128xf32>
    %15 = vector.broadcast %14 : vector<1x128xf32> to vector<128x128xf32>
    %16 = arith.addf %13, %15 : vector<128x128xf32>
    %cst_12 = arith.constant 0.000000e+00 : f32
    %17 = vector.broadcast %cst_12 : f32 to vector<128x128xf32>
    %18 = arith.maximumf %16, %17 : vector<128x128xf32>
    %c0_13 = arith.constant 0 : index
    %c0_14 = arith.constant 0 : index
    %19 = vector.load %arg3[%c0_13, %c0_14] : memref<8x1xi32, #tpu.memory_space<vmem>>, vector<8x1xi32>
    %c0_15 = arith.constant 0 : index
    %c0_16 = arith.constant 0 : index
    %20 = vector.load %arg2[%c0_15, %c0_16] : memref<1x128xi32, #tpu.memory_space<vmem>>, vector<1x128xi32>
    %21 = vector.broadcast %19 : vector<8x1xi32> to vector<8x128xi32>
    %22 = vector.broadcast %20 : vector<1x128xi32> to vector<8x128xi32>
    %23 = arith.cmpi eq, %21, %22 : vector<8x128xi32>
    %24 = arith.extui %23 : vector<8x128xi1> to vector<8x128xi32>
    %25 = arith.sitofp %24 : vector<8x128xi32> to vector<8x128xf32>
    %26 = arith.truncf %25 : vector<8x128xf32> to vector<8x128xbf16>
    %c0_17 = arith.constant 0 : index
    %c0_18 = arith.constant 0 : index
    %c0_19 = arith.constant 0 : index
    %27 = vector.load %arg9[%c0_17, %c0_18, %c0_19] : memref<1x8x128xf32, #tpu.memory_space<vmem>>, vector<1x8x128xf32>
    %28 = vector.shape_cast %27 : vector<1x8x128xf32> to vector<8x128xf32>
    %29 = arith.truncf %18 : vector<128x128xf32> to vector<128x128xbf16>
    %cst_20 = arith.constant dense<0.000000e+00> : vector<8x128xf32>
    %30 = tpu.matmul %26, %29, %cst_20 {dimension_numbers = #tpu.dot_dimension_numbers<[1], [0], [0], [1], [0, 0, 1, 1], [], []>} : vector<8x128xbf16>, vector<128x128xbf16>, vector<8x128xf32> -> vector<8x128xf32>
    %31 = arith.addf %28, %30 : vector<8x128xf32>
    %c0_21 = arith.constant 0 : index
    %c0_22 = arith.constant 0 : index
    %c0_23 = arith.constant 0 : index
    %32 = vector.load %arg9[%c0_21, %c0_22, %c0_23] : memref<1x8x128xf32, #tpu.memory_space<vmem>>, vector<1x8x128xf32>
    %33 = vector.shape_cast %32 : vector<1x8x128xf32> to vector<8x128xf32>
    %34 = vector.shape_cast %31 : vector<8x128xf32> to vector<1x8x128xf32>
    tpu.vector_store %arg9[%c0_21, %c0_22, %c0_23], %34 {strides = array<i32>} : memref<1x8x128xf32, #tpu.memory_space<vmem>>, vector<1x8x128xf32>,
    return
  }
  func.func @transform_0(%arg0: i32, %arg1: i32) -> (i32, i32) {
    %c1_i32 = arith.constant 1 : i32
    %0 = arith.muli %arg0, %c1_i32 : i32
    %1 = arith.addi %0, %arg1 : i32
    %c0_i32 = arith.constant 0 : i32
    %c0_i32_0 = arith.constant 0 : i32
    return %c0_i32, %1 : i32, i32
  }
  func.func @transform_1(%arg0: i32, %arg1: i32) -> (i32, i32) {
    %c0_i32 = arith.constant 0 : i32
    %c0_i32_0 = arith.constant 0 : i32
    %c0_i32_1 = arith.constant 0 : i32
    return %c0_i32, %c0_i32_0 : i32, i32
  }
  func.func @transform_2(%arg0: i32, %arg1: i32) -> (i32, i32) {
    %c1_i32 = arith.constant 1 : i32
    %0 = arith.muli %arg0, %c1_i32 : i32
    %1 = arith.addi %0, %arg1 : i32
    %c0_i32 = arith.constant 0 : i32
    %c0_i32_0 = arith.constant 0 : i32
    return %1, %c0_i32 : i32, i32
  }
  func.func @transform_3(%arg0: i32, %arg1: i32) -> (i32, i32) {
    %c0_i32 = arith.constant 0 : i32
    %c0_i32_0 = arith.constant 0 : i32
    %c0_i32_1 = arith.constant 0 : i32
    return %c0_i32, %c0_i32_0 : i32, i32
  }
  func.func @transform_4(%arg0: i32, %arg1: i32) -> (i32, i32) {
    %c0_i32 = arith.constant 0 : i32
    %c0_i32_0 = arith.constant 0 : i32
    %c0_i32_1 = arith.constant 0 : i32
    return %c0_i32, %c0_i32_0 : i32, i32
  }
  func.func @transform_5(%arg0: i32, %arg1: i32) -> (i32, i32) {
    %c0_i32 = arith.constant 0 : i32
    %c0_i32_0 = arith.constant 0 : i32
    %c0_i32_1 = arith.constant 0 : i32
    return %c0_i32, %c0_i32_0 : i32, i32
  }
  func.func @transform_6(%arg0: i32, %arg1: i32) -> (i32, i32) {
    %c0_i32 = arith.constant 0 : i32
    %c0_i32_0 = arith.constant 0 : i32
    %c0_i32_1 = arith.constant 0 : i32
    return %c0_i32, %c0_i32_0 : i32, i32
  }
  func.func @transform_7(%arg0: i32, %arg1: i32) -> (i32, i32, i32) {
    %c0_i32 = arith.constant 0 : i32
    %c0_i32_0 = arith.constant 0 : i32
    %c0_i32_1 = arith.constant 0 : i32
    return %arg0, %c0_i32, %c0_i32_0 : i32, i32, i32
  }
}

module attributes {stable_mosaic.version = 11 : i64} {
  func.func @_segsum_kernel(%arg0: i32, %arg1: i32, %arg2: memref<1x128xi32, #tpu.memory_space<vmem>>, %arg3: memref<8x1xi32, #tpu.memory_space<vmem>>, %arg4: memref<128x128xbf16, #tpu.memory_space<vmem>>, %arg5: memref<128x128xbf16, #tpu.memory_space<vmem>>, %arg6: memref<1x128xf32, #tpu.memory_space<vmem>>, %arg7: memref<128x128xbf16, #tpu.memory_space<vmem>>, %arg8: memref<1x128xf32, #tpu.memory_space<vmem>>, %arg9: memref<1x8x128xf32, #tpu.memory_space<vmem>>) attributes {dimension_semantics = [#tpu.dimension_semantics<parallel>, #tpu.dimension_semantics<arbitrary>], iteration_bounds = array<i64: 1, 1>, scalar_prefetch = 0 : i64, scratch_operands = 0 : i64, tpu.core_type = #tpu.core_type<tc>, window_params = [{transform_indices = @transform_0, window_bounds = array<i64: 1, 128>}, {pipeline_mode = #tpu.pipeline_mode<synchronous>, transform_indices = @transform_1, window_bounds = array<i64: 8, 1>}, {transform_indices = @transform_2, window_bounds = array<i64: 128, 128>}, {pipeline_mode = #tpu.pipeline_mode<synchronous>, transform_indices = @transform_3, window_bounds = array<i64: 128, 128>}, {pipeline_mode = #tpu.pipeline_mode<synchronous>, transform_indices = @transform_4, window_bounds = array<i64: 1, 128>}, {pipeline_mode = #tpu.pipeline_mode<synchronous>, transform_indices = @transform_5, window_bounds = array<i64: 128, 128>}, {pipeline_mode = #tpu.pipeline_mode<synchronous>, transform_indices = @transform_6, window_bounds = array<i64: 1, 128>}, {transform_indices = @transform_7, window_bounds = array<i64: 1, 8, 128>}]} {
    %c0_i32 = arith.constant 0 : i32
    %0 = arith.cmpi eq, %arg1, %c0_i32 : i32
    %1 = arith.extui %0 : i1 to i32
    %c0_i32_0 = arith.constant 0 : i32
    %2 = arith.cmpi ne, %1, %c0_i32_0 : i32
    scf.if %2 {
      %cst_24 = arith.constant 0.000000e+00 : f32
      %35 = vector.broadcast %cst_24 : f32 to vector<8x128xf32>
      %c0_25 = arith.constant 0 : index
      %c0_26 = arith.constant 0 : index
      %c0_27 = arith.constant 0 : index
      %36 = vector.load %arg9[%c0_25, %c0_26, %c0_27] : memref<1x8x128xf32, #tpu.memory_space<vmem>>, vector<1x8x128xf32>
      %37 = vector.shape_cast %36 : vector<1x8x128xf32> to vector<8x128xf32>
      %38 = vector.shape_cast %35 : vector<8x128xf32> to vector<1x8x128xf32>
      tpu.vector_store %arg9[%c0_25, %c0_26, %c0_27], %38 {strides = array<i32>} : memref<1x8x128xf32, #tpu.memory_space<vmem>>, vector<1x8x128xf32>,
    } else {
    }
    %c0 = arith.constant 0 : index
    %c0_1 = arith.constant 0 : index
    %3 = vector.load %arg4[%c0, %c0_1] : memref<128x128xbf16, #tpu.memory_space<vmem>>, vector<128x128xbf16>
    %c0_2 = arith.constant 0 : index
    %c0_3 = arith.constant 0 : index
    %4 = vector.load %arg5[%c0_2, %c0_3] : memref<128x128xbf16, #tpu.memory_space<vmem>>, vector<128x128xbf16>
    %cst = arith.constant dense<0.000000e+00> : vector<128x128xf32>
    %5 = tpu.matmul %3, %4, %cst {dimension_numbers = #tpu.dot_dimension_numbers<[1], [0], [0], [1], [0, 0, 1, 1], [], []>} : vector<128x128xbf16>, vector<128x128xbf16>, vector<128x128xf32> -> vector<128x128xf32>
    %c0_4 = arith.constant 0 : index
    %c0_5 = arith.constant 0 : index
    %6 = vector.load %arg6[%c0_4, %c0_5] : memref<1x128xf32, #tpu.memory_space<vmem>>, vector<1x128xf32>
    %7 = vector.broadcast %6 : vector<1x128xf32> to vector<128x128xf32>
    %8 = arith.addf %5, %7 : vector<128x128xf32>
    %cst_6 = arith.constant 0.000000e+00 : f32
    %9 = vector.broadcast %cst_6 : f32 to vector<128x128xf32>
    %10 = arith.maximumf %8, %9 : vector<128x128xf32>
    %11 = arith.truncf %10 : vector<128x128xf32> to vector<128x128xbf16>
    %c0_7 = arith.constant 0 : index
    %c0_8 = arith.constant 0 : index
    %12 = vector.load %arg7[%c0_7, %c0_8] : memref<128x128xbf16, #tpu.memory_space<vmem>>, vector<128x128xbf16>
    %cst_9 = arith.constant dense<0.000000e+00> : vector<128x128xf32>
    %13 = tpu.matmul %11, %12, %cst_9 {dimension_numbers = #tpu.dot_dimension_numbers<[1], [0], [0], [1], [0, 0, 1, 1], [], []>} : vector<128x128xbf16>, vector<128x128xbf16>, vector<128x128xf32> -> vector<128x128xf32>
    %c0_10 = arith.constant 0 : index
    %c0_11 = arith.constant 0 : index
    %14 = vector.load %arg8[%c0_10, %c0_11] : memref<1x128xf32, #tpu.memory_space<vmem>>, vector<1x128xf32>
    %15 = vector.broadcast %14 : vector<1x128xf32> to vector<128x128xf32>
    %16 = arith.addf %13, %15 : vector<128x128xf32>
    %cst_12 = arith.constant 0.000000e+00 : f32
    %17 = vector.broadcast %cst_12 : f32 to vector<128x128xf32>
    %18 = arith.maximumf %16, %17 : vector<128x128xf32>
    %c0_13 = arith.constant 0 : index
    %c0_14 = arith.constant 0 : index
    %19 = vector.load %arg3[%c0_13, %c0_14] : memref<8x1xi32, #tpu.memory_space<vmem>>, vector<8x1xi32>
    %c0_15 = arith.constant 0 : index
    %c0_16 = arith.constant 0 : index
    %20 = vector.load %arg2[%c0_15, %c0_16] : memref<1x128xi32, #tpu.memory_space<vmem>>, vector<1x128xi32>
    %21 = vector.broadcast %19 : vector<8x1xi32> to vector<8x128xi32>
    %22 = vector.broadcast %20 : vector<1x128xi32> to vector<8x128xi32>
    %23 = arith.cmpi eq, %21, %22 : vector<8x128xi32>
    %24 = arith.extui %23 : vector<8x128xi1> to vector<8x128xi32>
    %25 = arith.sitofp %24 : vector<8x128xi32> to vector<8x128xf32>
    %26 = arith.truncf %25 : vector<8x128xf32> to vector<8x128xbf16>
    %c0_17 = arith.constant 0 : index
    %c0_18 = arith.constant 0 : index
    %c0_19 = arith.constant 0 : index
    %27 = vector.load %arg9[%c0_17, %c0_18, %c0_19] : memref<1x8x128xf32, #tpu.memory_space<vmem>>, vector<1x8x128xf32>
    %28 = vector.shape_cast %27 : vector<1x8x128xf32> to vector<8x128xf32>
    %29 = arith.truncf %18 : vector<128x128xf32> to vector<128x128xbf16>
    %cst_20 = arith.constant dense<0.000000e+00> : vector<8x128xf32>
    %30 = tpu.matmul %26, %29, %cst_20 {dimension_numbers = #tpu.dot_dimension_numbers<[1], [0], [0], [1], [0, 0, 1, 1], [], []>} : vector<8x128xbf16>, vector<128x128xbf16>, vector<8x128xf32> -> vector<8x128xf32>
    %31 = arith.addf %28, %30 : vector<8x128xf32>
    %c0_21 = arith.constant 0 : index
    %c0_22 = arith.constant 0 : index
    %c0_23 = arith.constant 0 : index
    %32 = vector.load %arg9[%c0_21, %c0_22, %c0_23] : memref<1x8x128xf32, #tpu.memory_space<vmem>>, vector<1x8x128xf32>
    %33 = vector.shape_cast %32 : vector<1x8x128xf32> to vector<8x128xf32>
    %34 = vector.shape_cast %31 : vector<8x128xf32> to vector<1x8x128xf32>
    tpu.vector_store %arg9[%c0_21, %c0_22, %c0_23], %34 {strides = array<i32>} : memref<1x8x128xf32, #tpu.memory_space<vmem>>, vector<1x8x128xf32>,
    return
  }
  func.func @transform_0(%arg0: i32, %arg1: i32) -> (i32, i32) {
    %c1_i32 = arith.constant 1 : i32
    %0 = arith.muli %arg0, %c1_i32 : i32
    %1 = arith.addi %0, %arg1 : i32
    %c0_i32 = arith.constant 0 : i32
    %c0_i32_0 = arith.constant 0 : i32
    return %c0_i32, %1 : i32, i32
  }
  func.func @transform_1(%arg0: i32, %arg1: i32) -> (i32, i32) {
    %c0_i32 = arith.constant 0 : i32
    %c0_i32_0 = arith.constant 0 : i32
    %c0_i32_1 = arith.constant 0 : i32
    return %c0_i32, %c0_i32_0 : i32, i32
  }
  func.func @transform_2(%arg0: i32, %arg1: i32) -> (i32, i32) {
    %c1_i32 = arith.constant 1 : i32
    %0 = arith.muli %arg0, %c1_i32 : i32
    %1 = arith.addi %0, %arg1 : i32
    %c0_i32 = arith.constant 0 : i32
    %c0_i32_0 = arith.constant 0 : i32
    return %1, %c0_i32 : i32, i32
  }
  func.func @transform_3(%arg0: i32, %arg1: i32) -> (i32, i32) {
    %c0_i32 = arith.constant 0 : i32
    %c0_i32_0 = arith.constant 0 : i32
    %c0_i32_1 = arith.constant 0 : i32
    return %c0_i32, %c0_i32_0 : i32, i32
  }
  func.func @transform_4(%arg0: i32, %arg1: i32) -> (i32, i32) {
    %c0_i32 = arith.constant 0 : i32
    %c0_i32_0 = arith.constant 0 : i32
    %c0_i32_1 = arith.constant 0 : i32
    return %c0_i32, %c0_i32_0 : i32, i32
  }
  func.func @transform_5(%arg0: i32, %arg1: i32) -> (i32, i32) {
    %c0_i32 = arith.constant 0 : i32
    %c0_i32_0 = arith.constant 0 : i32
    %c0_i32_1 = arith.constant 0 : i32
    return %c0_i32, %c0_i32_0 : i32, i32
  }
  func.func @transform_6(%arg0: i32, %arg1: i32) -> (i32, i32) {
    %c0_i32 = arith.constant 0 : i32
    %c0_i32_0 = arith.constant 0 : i32
    %c0_i32_1 = arith.constant 0 : i32
    return %c0_i32, %c0_i32_0 : i32, i32
  }
  func.func @transform_7(%arg0: i32, %arg1: i32) -> (i32, i32, i32) {
    %c0_i32 = arith.constant 0 : i32
    %c0_i32_0 = arith.constant 0 : i32
    %c0_i32_1 = arith.constant 0 : i32
    return %arg0, %c0_i32, %c0_i32_0 : i32, i32, i32
  }
}

</mosaic_0001>

<llo_original>
// kernel: tpu_custom_call.1
$region0: #{tpu_custom_call.1}
  #allocation0 [shape = 'u32[]', space=smem, size = 0x4, offset = 0x4, fixed_abs, tag = 'smem constant byte address 0x4 - core index']
  #allocation1 [shape = 'u32[144,128]{1,0:T(1,128)}', space=vmem, size = 0x12000, scoped, tag = 'internal scratch']
  %s0 = inlined_call_operand.vmem [shape: s32[1,128], index: 0, kind: input, shape index: {}]
  %s1 = inlined_call_operand.vmem [shape: s32[8,1], index: 1, kind: input, shape index: {}]
  %s2 = inlined_call_operand.hbm [shape: bf16[128,128], index: 2, kind: input, shape index: {}]
  %s3 = inlined_call_operand.hbm [shape: bf16[128,128], index: 3, kind: input, shape index: {}]
  %s4 = inlined_call_operand.vmem [shape: f32[1,128], index: 4, kind: input, shape index: {}]
  %s5 = inlined_call_operand.hbm [shape: bf16[128,128], index: 5, kind: input, shape index: {}]
  %s6 = inlined_call_operand.vmem [shape: f32[1,128], index: 6, kind: input, shape index: {}]
  %s7 = inlined_call_operand.hbm [shape: f32[1,8,128], index: 7, kind: output, shape index: {}]
  %s8 = sld [smem:[#allocation0]]
  $region54: #{tpu_custom_call.1} parent=0
    _
  %s10 = ssub.s32 1, %s8
  %s11 = scalar_select 0, %s10, %s8
  $region1: #{tpu_custom_call.1} parent=0
    #allocation2 [shape = 'u8[32768]{0}', space=vmem, size = 0x8000, scoped, tag = 'input window, operand 2, single buffered']
    #allocation3 [shape = 's32[1]{0}', space=sflag, size = 0x4, scoped, tag = 'scoped memory for tpu_custom_call.1']
    #allocation4 [shape = 's32[1]{0}', space=sflag, size = 0x4, scoped, tag = 'scoped memory for tpu_custom_call.1']
    #allocation5 [shape = 'u8[32768]{0}', space=vmem, size = 0x8000, scoped, tag = 'input window, operand 3, single buffered']
    #allocation6 [shape = 's32[1]{0}', space=sflag, size = 0x4, scoped, tag = 'scoped memory for tpu_custom_call.1']
    #allocation7 [shape = 'u8[32768]{0}', space=vmem, size = 0x8000, scoped, tag = 'input window, operand 5, single buffered']
    #allocation8 [shape = 'u8[4096]{0}', space=vmem, size = 0x1000, scoped, tag = 'output window, operand 0, single buffered']
    %12 = vsyncpa [#allocation3], 0
    %13 = vsyncpa [#allocation6], 0
    %14 = vsyncpa [#allocation4], 0
    // Predicated region
    $region2: #{tpu_custom_call.1} parent=1 // pred_check
      _
    $region3: #{tpu_custom_call.1} parent=1 // pred_check_branch
      %16 = sbr.rel (0) target = $region5
    $region4: #{tpu_custom_call.1} parent=1 // pred_region
      %s17 = sadd.s32 0, 0
      %p18 = scmp.lt.s32.totalorder %s17, 0
      %s19 = scalar_select %p18, %s17, 0
      %s20 = scalar_lea.vmem %s0, %s19
      %s21 = sadd.s32 0, 0
    $region5: #{tpu_custom_call.1} parent=1 // pred_fallthru
      _
    // Predicated region
    $region6: #{tpu_custom_call.1} parent=1 // pred_check
      _
    $region7: #{tpu_custom_call.1} parent=1 // pred_check_branch
      %23 = sbr.rel (0) target = $region9
    $region8: #{tpu_custom_call.1} parent=1 // pred_region
      _
    $region9: #{tpu_custom_call.1} parent=1 // pred_fallthru
      _
    // Predicated region
    $region10: #{tpu_custom_call.1} parent=1 // pred_check
      _
    $region11: #{tpu_custom_call.1} parent=1 // pred_check_branch
      %25 = sbr.rel (0) target = $region13
    $region12: #{tpu_custom_call.1} parent=1 // pred_region
      %s26 = sadd.s32 0, 0
      %s27 = smul.u32 16, %s26
      %s29 = ssub.s32 1024, 1024
      %30 = vsyncadd [#allocation3], %s29
      %s31 = smul.addr %s27, 64
      %s32 = scalar_lea.hbm %s2, %s31
      %s33 = sshll.u32 [#allocation2], 4
      %s34 = int_to_ptr.vmem [resolvable:$true] %s33
      %39 = dma.hbm_to_vmem [thread:$0]  %s32, 1024, %s34, [#allocation3], 64, 64, 4
    $region13: #{tpu_custom_call.1} parent=1 // pred_fallthru
      _
    // Predicated region
    $region14: #{tpu_custom_call.1} parent=1 // pred_check
      _
    $region15: #{tpu_custom_call.1} parent=1 // pred_check_branch
      %41 = sbr.rel (0) target = $region17
    $region16: #{tpu_custom_call.1} parent=1 // pred_region
      %s43 = ssub.s32 1024, 1024
      %44 = vsyncadd [#allocation6], %s43
      %s45 = sshll.u32 [#allocation5], 4
      %s46 = int_to_ptr.vmem [resolvable:$true] %s45
      %51 = dma.hbm_to_vmem [thread:$0]  %s3, 1024, %s46, [#allocation6], 64, 64, 4
    $region17: #{tpu_custom_call.1} parent=1 // pred_fallthru
      _
    // Predicated region
    $region18: #{tpu_custom_call.1} parent=1 // pred_check
      _
    $region19: #{tpu_custom_call.1} parent=1 // pred_check_branch
      %53 = sbr.rel (0) target = $region21
    $region20: #{tpu_custom_call.1} parent=1 // pred_region
      _
    $region21: #{tpu_custom_call.1} parent=1 // pred_fallthru
      _
    // Predicated region
    $region22: #{tpu_custom_call.1} parent=1 // pred_check
      _
    $region23: #{tpu_custom_call.1} parent=1 // pred_check_branch
      %55 = sbr.rel (0) target = $region25
    $region24: #{tpu_custom_call.1} parent=1 // pred_region
      %s57 = ssub.s32 1024, 1024
      %58 = vsyncadd [#allocation6], %s57
      %s59 = sshll.u32 [#allocation7], 4
      %s60 = int_to_ptr.vmem [resolvable:$true] %s59
      %65 = dma.hbm_to_vmem [thread:$0]  %s5, 1024, %s60, [#allocation6], 64, 64, 4
    $region25: #{tpu_custom_call.1} parent=1 // pred_fallthru
      _
    // Predicated region
    $region26: #{tpu_custom_call.1} parent=1 // pred_check
      _
    $region27: #{tpu_custom_call.1} parent=1 // pred_check_branch
      %67 = sbr.rel (0) target = $region29
    $region28: #{tpu_custom_call.1} parent=1 // pred_region
      _
    $region29: #{tpu_custom_call.1} parent=1 // pred_fallthru
      _
    // Predicated region
    $region30: #{tpu_custom_call.1} parent=1 // pred_check
      _
    $region31: #{tpu_custom_call.1} parent=1 // pred_check_branch
      %69 = sbr.rel (0) target = $region33
    $region32: #{tpu_custom_call.1} parent=1 // pred_region
      %70 = dma.done [#allocation3], 1024
    $region33: #{tpu_custom_call.1} parent=1 // pred_fallthru
      _
    // Predicated region
    $region34: #{tpu_custom_call.1} parent=1 // pred_check
      _
    $region35: #{tpu_custom_call.1} parent=1 // pred_check_branch
      %72 = sbr.rel (0) target = $region37
    $region36: #{tpu_custom_call.1} parent=1 // pred_region
      %73 = dma.done [#allocation6], 1024
    $region37: #{tpu_custom_call.1} parent=1 // pred_fallthru
      _
    // Predicated region
    $region38: #{tpu_custom_call.1} parent=1 // pred_check
      _
    $region39: #{tpu_custom_call.1} parent=1 // pred_check_branch
      %75 = sbr.rel (0) target = $region41
    $region40: #{tpu_custom_call.1} parent=1 // pred_region
      %76 = dma.done [#allocation6], 1024
    $region41: #{tpu_custom_call.1} parent=1 // pred_fallthru
      _
    %s77 = sadd.s32 0, 0
    %p78 = scmp.lt.s32.totalorder %s77, 0
    %s79 = scalar_select %p78, %s77, 0
    %s80 = scalar_lea.vmem %s0, %s79
    %s81 = sadd.s32 0, 0
    %p82 = scmp.lt.s32.totalorder %s81, 0
    %s83 = scalar_select %p82, %s81, 0
    %s84 = scalar_lea.vmem %s0, %s83
    %s85 = sadd.s32 0, 0
    %s86 = sadd.s32 0, 0
    %s87 = smul.u32 16, %s86
    %p89 = scmp.eq.s32.totalorder 0, 0
    // Predicated region
    $region42: #{tpu_custom_call.1} parent=1 // pred_check
      %p90 = pneg %p89
    $region43: #{tpu_custom_call.1} parent=1 // pred_check_branch
      %92 = sbr.rel (%p90) target = $region45
    $region44: #{tpu_custom_call.1} parent=1 // pred_region
      %93 = vst [vmem:[#allocation8] sm:$0xff] 0.0
    $region45: #{tpu_custom_call.1} parent=1 // pred_fallthru
      _
    %v94 = vld [vmem:[#allocation2] sm:$0xf]
    %v95 = vld [vmem:[#allocation2 + $0x4] sm:$0xf]
    %v96 = vld [vmem:[#allocation2 + $0x8] sm:$0xf]
    %v97 = vld [vmem:[#allocation2 + $0xc] sm:$0xf]
    %v98 = vld [vmem:[#allocation2 + $0x10] sm:$0xf]
    %v99 = vld [vmem:[#allocation2 + $0x14] sm:$0xf]
    %v100 = vld [vmem:[#allocation2 + $0x18] sm:$0xf]
    %v101 = vld [vmem:[#allocation2 + $0x1c] sm:$0xf]
    %v102 = vld [vmem:[#allocation2 + $0x20] sm:$0xf]
    %v103 = vld [vmem:[#allocation2 + $0x24] sm:$0xf]
    %v104 = vld [vmem:[#allocation2 + $0x28] sm:$0xf]
    %v105 = vld [vmem:[#allocation2 + $0x2c] sm:$0xf]
    %v106 = vld [vmem:[#allocation2 + $0x30] sm:$0xf]
    %v107 = vld [vmem:[#allocation2 + $0x34] sm:$0xf]
    %v108 = vld [vmem:[#allocation2 + $0x38] sm:$0xf]
    %v109 = vld [vmem:[#allocation2 + $0x3c] sm:$0xf]
    %v110 = vld [vmem:[#allocation5] sm:$0xf]
    %v111 = vld [vmem:[#allocation5 + $0x4] sm:$0xf]
    %v112 = vld [vmem:[#allocation5 + $0x8] sm:$0xf]
    %v113 = vld [vmem:[#allocation5 + $0xc] sm:$0xf]
    %v114 = vld [vmem:[#allocation5 + $0x10] sm:$0xf]
    %v115 = vld [vmem:[#allocation5 + $0x14] sm:$0xf]
    %v116 = vld [vmem:[#allocation5 + $0x18] sm:$0xf]
    %v117 = vld [vmem:[#allocation5 + $0x1c] sm:$0xf]
    %v118 = vld [vmem:[#allocation5 + $0x20] sm:$0xf]
    %v119 = vld [vmem:[#allocation5 + $0x24] sm:$0xf]
    %v120 = vld [vmem:[#allocation5 + $0x28] sm:$0xf]
    %v121 = vld [vmem:[#allocation5 + $0x2c] sm:$0xf]
    %v122 = vld [vmem:[#allocation5 + $0x30] sm:$0xf]
    %v123 = vld [vmem:[#allocation5 + $0x34] sm:$0xf]
    %v124 = vld [vmem:[#allocation5 + $0x38] sm:$0xf]
    %v125 = vld [vmem:[#allocation5 + $0x3c] sm:$0xf]
    %v126 = vld [vmem:[%s4] sm:$0x1]
    %v128 = vlaneseq
    %v129 = vshrl.u32 %v128, 7
    %v130 = vsub.s32 0, %v129
    %v131 = vrot.slane %v126, %v130
    %v149 = vunpack.c.l.b16 %v94
    %v150 = vunpack.c.l.b16 %v95
    %v151 = vunpack.c.l.b16 %v96
    %v152 = vunpack.c.l.b16 %v97
    %v153 = vunpack.c.l.b16 %v98
    %v154 = vunpack.c.l.b16 %v99
    %v155 = vunpack.c.l.b16 %v100
    %v156 = vunpack.c.l.b16 %v101
    %v157 = vunpack.c.l.b16 %v102
    %v158 = vunpack.c.l.b16 %v103
    %v159 = vunpack.c.l.b16 %v104
    %v160 = vunpack.c.l.b16 %v105
    %v161 = vunpack.c.l.b16 %v106
    %v162 = vunpack.c.l.b16 %v107
    %v163 = vunpack.c.l.b16 %v108
    %v164 = vunpack.c.l.b16 %v109
    %v165 = vpack.c.b16 %v150, %v149
    %v166 = vpack.c.b16 %v152, %v151
    %v167 = vpack.c.b16 %v154, %v153
    %v168 = vpack.c.b16 %v156, %v155
    %v169 = vpack.c.b16 %v158, %v157
    %v170 = vpack.c.b16 %v160, %v159
    %v171 = vpack.c.b16 %v162, %v161
    %v172 = vpack.c.b16 %v164, %v163
    %v197 = vunpack.c.l.b16 %v110
    %v198 = vunpack.c.l.b16 %v111
    %v199 = vunpack.c.l.b16 %v112
    %v200 = vunpack.c.l.b16 %v113
    %v201 = vunpack.c.l.b16 %v114
    %v202 = vunpack.c.l.b16 %v115
    %v203 = vunpack.c.l.b16 %v116
    %v204 = vunpack.c.l.b16 %v117
    %v205 = vunpack.c.l.b16 %v118
    %v206 = vunpack.c.l.b16 %v119
    %v207 = vunpack.c.l.b16 %v120
    %v208 = vunpack.c.l.b16 %v121
    %v209 = vunpack.c.l.b16 %v122
    %v210 = vunpack.c.l.b16 %v123
    %v211 = vunpack.c.l.b16 %v124
    %v212 = vunpack.c.l.b16 %v125
    %v213 = vpack.c.b16 %v198, %v197
    %v214 = vpack.c.b16 %v200, %v199
    %v215 = vpack.c.b16 %v202, %v201
    %v216 = vpack.c.b16 %v204, %v203
    %v217 = vpack.c.b16 %v206, %v205
    %v218 = vpack.c.b16 %v208, %v207
    %v219 = vpack.c.b16 %v210, %v209
    %v220 = vpack.c.b16 %v212, %v211
    %229 = vmatprep.subr.bf16.mxu0 0
    %230 = vmatpush1.bf16.msra.mxu0 %v220
    %231 = vmatprep.subr.bf16.mxu0 0
    %232 = vmatpush1.bf16.msra.mxu0 %v219
    %233 = vmatprep.subr.bf16.mxu0 0
    %234 = vmatpush1.bf16.msra.mxu0 %v218
    %235 = vmatprep.subr.bf16.mxu0 0
    %236 = vmatpush1.bf16.msra.mxu0 %v217
    %237 = vmatprep.subr.bf16.mxu0 0
    %238 = vmatpush1.bf16.msra.mxu0 %v216
    %239 = vmatprep.subr.bf16.mxu0 0
    %240 = vmatpush1.bf16.msra.mxu0 %v215
    %241 = vmatprep.subr.bf16.mxu0 0
    %242 = vmatpush1.bf16.msra.mxu0 %v214
    %243 = vmatprep.subr.bf16.mxu0 0
    %244 = vmatpush1.bf16.msra.mxu0 %v213
    %245 = vmatprep.subr.bf16.mxu0 0
    %246 = vmatpush2.bf16.msra.mxu0 0
    %247 = vmatprep.subr.bf16.mxu0 0
    %248 = vmatpush2.bf16.msra.mxu0 0
    %249 = vmatprep.subr.bf16.mxu0 0
    %250 = vmatpush2.bf16.msra.mxu0 0
    %251 = vmatprep.subr.bf16.mxu0 0
    %252 = vmatpush2.bf16.msra.mxu0 0
    %253 = vmatprep.subr.bf16.mxu0 0
    %254 = vmatpush2.bf16.msra.mxu0 0
    %255 = vmatprep.subr.bf16.mxu0 0
    %256 = vmatpush2.bf16.msra.mxu0 0
    %257 = vmatprep.subr.bf16.mxu0 0
    %258 = vmatpush2.bf16.msra.mxu0 0
    %259 = vmatprep.subr.bf16.mxu0 0
    %260 = vmatpush2.bf16.msra.mxu0 0
    %261 = vmatprep.mubr.bf16.mxu0 0
    %262 = vmatmul.mubr.bf16.gmra.mxu0 %v165
    %v263 = vpop.f32.mrf.mxu0
    %v264 = vadd.f32 %v131, %v263
    %v265 = vpop.f32.mrf.mxu0
    %v266 = vpop.f32.mrf.mxu0
    %v267 = vadd.f32 %v131, %v266
    %v268 = vpop.f32.mrf.mxu0
    %269 = vmatprep.mubr.bf16.mxu0 0
    %270 = vmatmul.mubr.bf16.gmra.mxu0 %v166
    %v271 = vpop.f32.mrf.mxu0
    %v272 = vadd.f32 %v131, %v271
    %v273 = vpop.f32.mrf.mxu0
    %v274 = vpop.f32.mrf.mxu0
    %v275 = vadd.f32 %v131, %v274
    %v276 = vpop.f32.mrf.mxu0
    %277 = vmatprep.mubr.bf16.mxu0 0
    %278 = vmatmul.mubr.bf16.gmra.mxu0 %v167
    %v279 = vpop.f32.mrf.mxu0
    %v280 = vadd.f32 %v131, %v279
    %v281 = vpop.f32.mrf.mxu0
    %v282 = vpop.f32.mrf.mxu0
    %v283 = vadd.f32 %v131, %v282
    %v284 = vpop.f32.mrf.mxu0
    %285 = vmatprep.mubr.bf16.mxu0 0
    %286 = vmatmul.mubr.bf16.gmra.mxu0 %v168
    %v287 = vpop.f32.mrf.mxu0
    %v288 = vadd.f32 %v131, %v287
    %v289 = vpop.f32.mrf.mxu0
    %v290 = vpop.f32.mrf.mxu0
    %v291 = vadd.f32 %v131, %v290
    %v292 = vpop.f32.mrf.mxu0
    %293 = vmatprep.mubr.bf16.mxu0 0
    %294 = vmatmul.mubr.bf16.gmra.mxu0 %v169
    %v295 = vpop.f32.mrf.mxu0
    %v296 = vadd.f32 %v131, %v295
    %v297 = vpop.f32.mrf.mxu0
    %v298 = vpop.f32.mrf.mxu0
    %v299 = vadd.f32 %v131, %v298
    %v300 = vpop.f32.mrf.mxu0
    %301 = vmatprep.mubr.bf16.mxu0 0
    %302 = vmatmul.mubr.bf16.gmra.mxu0 %v170
    %v303 = vpop.f32.mrf.mxu0
    %v304 = vadd.f32 %v131, %v303
    %v305 = vpop.f32.mrf.mxu0
    %v306 = vpop.f32.mrf.mxu0
    %v307 = vadd.f32 %v131, %v306
    %v308 = vpop.f32.mrf.mxu0
    %309 = vmatprep.mubr.bf16.mxu0 0
    %310 = vmatmul.mubr.bf16.gmra.mxu0 %v171
    %v311 = vpop.f32.mrf.mxu0
    %v312 = vadd.f32 %v131, %v311
    %v313 = vpop.f32.mrf.mxu0
    %v314 = vpop.f32.mrf.mxu0
    %v315 = vadd.f32 %v131, %v314
    %v316 = vpop.f32.mrf.mxu0
    %317 = vmatprep.mubr.bf16.mxu0 0
    %318 = vmatmul.mubr.bf16.gmra.mxu0 %v172
    %v319 = vpop.f32.mrf.mxu0
    %v320 = vadd.f32 %v131, %v319
    %v321 = vpop.f32.mrf.mxu0
    %v322 = vpop.f32.mrf.mxu0
    %v323 = vadd.f32 %v131, %v322
    %v324 = vpop.f32.mrf.mxu0
    %325 = vdwg.mxu0
    %v326 = vmax.f32 %v264, 0.0
    %v327 = vmax.f32 %v267, 0.0
    %v328 = vmax.f32 %v272, 0.0
    %v329 = vmax.f32 %v275, 0.0
    %v330 = vmax.f32 %v280, 0.0
    %v331 = vmax.f32 %v283, 0.0
    %v332 = vmax.f32 %v288, 0.0
    %v333 = vmax.f32 %v291, 0.0
    %v334 = vmax.f32 %v296, 0.0
    %v335 = vmax.f32 %v299, 0.0
    %v336 = vmax.f32 %v304, 0.0
    %v337 = vmax.f32 %v307, 0.0
    %v338 = vmax.f32 %v312, 0.0
    %v339 = vmax.f32 %v315, 0.0
    %v340 = vmax.f32 %v320, 0.0
    %v341 = vmax.f32 %v323, 0.0
    %v342 = vpack.c.bf16 %v327, %v326
    %v343 = vpack.c.bf16 %v329, %v328
    %v344 = vpack.c.bf16 %v331, %v330
    %v345 = vpack.c.bf16 %v333, %v332
    %v346 = vpack.c.bf16 %v335, %v334
    %v347 = vpack.c.bf16 %v337, %v336
    %v348 = vpack.c.bf16 %v339, %v338
    %v349 = vpack.c.bf16 %v341, %v340
    %v350 = vld [vmem:[#allocation7] sm:$0xf]
    %v351 = vld [vmem:[#allocation7 + $0x4] sm:$0xf]
    %v352 = vld [vmem:[#allocation7 + $0x8] sm:$0xf]
    %v353 = vld [vmem:[#allocation7 + $0xc] sm:$0xf]
    %v354 = vld [vmem:[#allocation7 + $0x10] sm:$0xf]
    %v355 = vld [vmem:[#allocation7 + $0x14] sm:$0xf]
    %v356 = vld [vmem:[#allocation7 + $0x18] sm:$0xf]
    %v357 = vld [vmem:[#allocation7 + $0x1c] sm:$0xf]
    %v358 = vld [vmem:[#allocation7 + $0x20] sm:$0xf]
    %v359 = vld [vmem:[#allocation7 + $0x24] sm:$0xf]
    %v360 = vld [vmem:[#allocation7 + $0x28] sm:$0xf]
    %v361 = vld [vmem:[#allocation7 + $0x2c] sm:$0xf]
    %v362 = vld [vmem:[#allocation7 + $0x30] sm:$0xf]
    %v363 = vld [vmem:[#allocation7 + $0x34] sm:$0xf]
    %v364 = vld [vmem:[#allocation7 + $0x38] sm:$0xf]
    %v365 = vld [vmem:[#allocation7 + $0x3c] sm:$0xf]
    %v366 = vld [vmem:[%s6] sm:$0x1]
    %v368 = vlaneseq
    %v369 = vshrl.u32 %v368, 7
    %v370 = vsub.s32 0, %v369
    %v371 = vrot.slane %v366, %v370
    %v389 = vunpack.c.l.b16 %v350
    %v390 = vunpack.c.l.b16 %v351
    %v391 = vunpack.c.l.b16 %v352
    %v392 = vunpack.c.l.b16 %v353
    %v393 = vunpack.c.l.b16 %v354
    %v394 = vunpack.c.l.b16 %v355
    %v395 = vunpack.c.l.b16 %v356
    %v396 = vunpack.c.l.b16 %v357
    %v397 = vunpack.c.l.b16 %v358
    %v398 = vunpack.c.l.b16 %v359
    %v399 = vunpack.c.l.b16 %v360
    %v400 = vunpack.c.l.b16 %v361
    %v401 = vunpack.c.l.b16 %v362
    %v402 = vunpack.c.l.b16 %v363
    %v403 = vunpack.c.l.b16 %v364
    %v404 = vunpack.c.l.b16 %v365
    %v405 = vpack.c.b16 %v390, %v389
    %v406 = vpack.c.b16 %v392, %v391
    %v407 = vpack.c.b16 %v394, %v393
    %v408 = vpack.c.b16 %v396, %v395
    %v409 = vpack.c.b16 %v398, %v397
    %v410 = vpack.c.b16 %v400, %v399
    %v411 = vpack.c.b16 %v402, %v401
    %v412 = vpack.c.b16 %v404, %v403
    %421 = vmatprep.subr.bf16.mxu0 0
    %422 = vmatpush1.bf16.msra.mxu0 %v412
    %423 = vmatprep.subr.bf16.mxu0 0
    %424 = vmatpush1.bf16.msra.mxu0 %v411
    %425 = vmatprep.subr.bf16.mxu0 0
    %426 = vmatpush1.bf16.msra.mxu0 %v410
    %427 = vmatprep.subr.bf16.mxu0 0
    %428 = vmatpush1.bf16.msra.mxu0 %v409
    %429 = vmatprep.subr.bf16.mxu0 0
    %430 = vmatpush1.bf16.msra.mxu0 %v408
    %431 = vmatprep.subr.bf16.mxu0 0
    %432 = vmatpush1.bf16.msra.mxu0 %v407
    %433 = vmatprep.subr.bf16.mxu0 0
    %434 = vmatpush1.bf16.msra.mxu0 %v406
    %435 = vmatprep.subr.bf16.mxu0 0
    %436 = vmatpush1.bf16.msra.mxu0 %v405
    %437 = vmatprep.subr.bf16.mxu0 0
    %438 = vmatpush2.bf16.msra.mxu0 0
    %439 = vmatprep.subr.bf16.mxu0 0
    %440 = vmatpush2.bf16.msra.mxu0 0
    %441 = vmatprep.subr.bf16.mxu0 0
    %442 = vmatpush2.bf16.msra.mxu0 0
    %443 = vmatprep.subr.bf16.mxu0 0
    %444 = vmatpush2.bf16.msra.mxu0 0
    %445 = vmatprep.subr.bf16.mxu0 0
    %446 = vmatpush2.bf16.msra.mxu0 0
    %447 = vmatprep.subr.bf16.mxu0 0
    %448 = vmatpush2.bf16.msra.mxu0 0
    %449 = vmatprep.subr.bf16.mxu0 0
    %450 = vmatpush2.bf16.msra.mxu0 0
    %451 = vmatprep.subr.bf16.mxu0 0
    %452 = vmatpush2.bf16.msra.mxu0 0
    %453 = vmatprep.mubr.bf16.mxu0 0
    %454 = vmatmul.mubr.bf16.gmra.mxu0 %v342
    %v455 = vpop.f32.mrf.mxu0
    %v456 = vadd.f32 %v371, %v455
    %v457 = vpop.f32.mrf.mxu0
    %v458 = vpop.f32.mrf.mxu0
    %v459 = vadd.f32 %v371, %v458
    %v460 = vpop.f32.mrf.mxu0
    %461 = vmatprep.mubr.bf16.mxu0 0
    %462 = vmatmul.mubr.bf16.gmra.mxu0 %v343
    %v463 = vpop.f32.mrf.mxu0
    %v464 = vadd.f32 %v371, %v463
    %v465 = vpop.f32.mrf.mxu0
    %v466 = vpop.f32.mrf.mxu0
    %v467 = vadd.f32 %v371, %v466
    %v468 = vpop.f32.mrf.mxu0
    %469 = vmatprep.mubr.bf16.mxu0 0
    %470 = vmatmul.mubr.bf16.gmra.mxu0 %v344
    %v471 = vpop.f32.mrf.mxu0
    %v472 = vadd.f32 %v371, %v471
    %v473 = vpop.f32.mrf.mxu0
    %v474 = vpop.f32.mrf.mxu0
    %v475 = vadd.f32 %v371, %v474
    %v476 = vpop.f32.mrf.mxu0
    %477 = vmatprep.mubr.bf16.mxu0 0
    %478 = vmatmul.mubr.bf16.gmra.mxu0 %v345
    %v479 = vpop.f32.mrf.mxu0
    %v480 = vadd.f32 %v371, %v479
    %v481 = vpop.f32.mrf.mxu0
    %v482 = vpop.f32.mrf.mxu0
    %v483 = vadd.f32 %v371, %v482
    %v484 = vpop.f32.mrf.mxu0
    %485 = vmatprep.mubr.bf16.mxu0 0
    %486 = vmatmul.mubr.bf16.gmra.mxu0 %v346
    %v487 = vpop.f32.mrf.mxu0
    %v488 = vadd.f32 %v371, %v487
    %v489 = vpop.f32.mrf.mxu0
    %v490 = vpop.f32.mrf.mxu0
    %v491 = vadd.f32 %v371, %v490
    %v492 = vpop.f32.mrf.mxu0
    %493 = vmatprep.mubr.bf16.mxu0 0
    %494 = vmatmul.mubr.bf16.gmra.mxu0 %v347
    %v495 = vpop.f32.mrf.mxu0
    %v496 = vadd.f32 %v371, %v495
    %v497 = vpop.f32.mrf.mxu0
    %v498 = vpop.f32.mrf.mxu0
    %v499 = vadd.f32 %v371, %v498
    %v500 = vpop.f32.mrf.mxu0
    %501 = vmatprep.mubr.bf16.mxu0 0
    %502 = vmatmul.mubr.bf16.gmra.mxu0 %v348
    %v503 = vpop.f32.mrf.mxu0
    %v504 = vadd.f32 %v371, %v503
    %v505 = vpop.f32.mrf.mxu0
    %v506 = vpop.f32.mrf.mxu0
    %v507 = vadd.f32 %v371, %v506
    %v508 = vpop.f32.mrf.mxu0
    %509 = vmatprep.mubr.bf16.mxu0 0
    %510 = vmatmul.mubr.bf16.gmra.mxu0 %v349
    %v511 = vpop.f32.mrf.mxu0
    %v512 = vadd.f32 %v371, %v511
    %v513 = vpop.f32.mrf.mxu0
    %v514 = vpop.f32.mrf.mxu0
    %v515 = vadd.f32 %v371, %v514
    %v516 = vpop.f32.mrf.mxu0
    %517 = vdwg.mxu0
    %v518 = vmax.f32 %v456, 0.0
    %v519 = vmax.f32 %v459, 0.0
    %v520 = vmax.f32 %v464, 0.0
    %v521 = vmax.f32 %v467, 0.0
    %v522 = vmax.f32 %v472, 0.0
    %v523 = vmax.f32 %v475, 0.0
    %v524 = vmax.f32 %v480, 0.0
    %v525 = vmax.f32 %v483, 0.0
    %v526 = vmax.f32 %v488, 0.0
    %v527 = vmax.f32 %v491, 0.0
    %v528 = vmax.f32 %v496, 0.0
    %v529 = vmax.f32 %v499, 0.0
    %v530 = vmax.f32 %v504, 0.0
    %v531 = vmax.f32 %v507, 0.0
    %v532 = vmax.f32 %v512, 0.0
    %v533 = vmax.f32 %v515, 0.0
    %v534 = vld [vmem:[%s1] sm:$0xff]
    %v535 = vld [vmem:[%s84] sm:$0x1]
    %536 = vset.pattern.permute.xlu0 0
    %537 = vperm.xlu0 %536, %v534
    %v538 = vpop.permute.xlu0 %537
    %v539 = vlaneseq
    %v540 = vshrl.u32 %v539, 7
    %v541 = vsub.s32 0, %v540
    %v542 = vrot.slane %v535, %v541
    %vm543 = vcmp.eq.s32.totalorder %v538, %v542
    %v544 = vsel %vm543, 1, 0
    %v545 = vcvt.s32.f32 %v544
    %v546 = vpack.c.bf16 %v545, %v545
    %v547 = vld [vmem:[#allocation8] sm:$0xff]
    %v548 = vpack.c.bf16 %v519, %v518
    %v549 = vpack.c.bf16 %v521, %v520
    %v550 = vpack.c.bf16 %v523, %v522
    %v551 = vpack.c.bf16 %v525, %v524
    %v552 = vpack.c.bf16 %v527, %v526
    %v553 = vpack.c.bf16 %v529, %v528
    %v554 = vpack.c.bf16 %v531, %v530
    %v555 = vpack.c.bf16 %v533, %v532
    %556 = vmatprep.subr.bf16.mxu0 0
    %557 = vmatpush1.bf16.msra.mxu0 %v555
    %558 = vmatprep.subr.bf16.mxu0 0
    %559 = vmatpush1.bf16.msra.mxu0 %v554
    %560 = vmatprep.subr.bf16.mxu0 0
    %561 = vmatpush1.bf16.msra.mxu0 %v553
    %562 = vmatprep.subr.bf16.mxu0 0
    %563 = vmatpush1.bf16.msra.mxu0 %v552
    %564 = vmatprep.subr.bf16.mxu0 0
    %565 = vmatpush1.bf16.msra.mxu0 %v551
    %566 = vmatprep.subr.bf16.mxu0 0
    %567 = vmatpush1.bf16.msra.mxu0 %v550
    %568 = vmatprep.subr.bf16.mxu0 0
    %569 = vmatpush1.bf16.msra.mxu0 %v549
    %570 = vmatprep.subr.bf16.mxu0 0
    %571 = vmatpush1.bf16.msra.mxu0 %v548
    %572 = vmatprep.subr.bf16.mxu0 0
    %573 = vmatpush2.bf16.msra.mxu0 0
    %574 = vmatprep.subr.bf16.mxu0 0
    %575 = vmatpush2.bf16.msra.mxu0 0
    %576 = vmatprep.subr.bf16.mxu0 0
    %577 = vmatpush2.bf16.msra.mxu0 0
    %578 = vmatprep.subr.bf16.mxu0 0
    %579 = vmatpush2.bf16.msra.mxu0 0
    %580 = vmatprep.subr.bf16.mxu0 0
    %581 = vmatpush2.bf16.msra.mxu0 0
    %582 = vmatprep.subr.bf16.mxu0 0
    %583 = vmatpush2.bf16.msra.mxu0 0
    %584 = vmatprep.subr.bf16.mxu0 0
    %585 = vmatpush2.bf16.msra.mxu0 0
    %586 = vmatprep.subr.bf16.mxu0 0
    %587 = vmatpush2.bf16.msra.mxu0 0
    %588 = vmatprep.mubr.bf16.mxu0 0
    %589 = vmatmul.mubr.bf16.gmra.mxu0 %v546
    %v590 = vpop.f32.mrf.mxu0
    %v591 = vadd.f32 0.0, %v590
    %v592 = vpop.f32.mrf.mxu0
    %v593 = vpop.f32.mrf.mxu0
    %v594 = vpop.f32.mrf.mxu0
    %595 = vdwg.mxu0
    %v596 = vadd.f32 %v547, %v591
    %597 = vst [vmem:[#allocation8] sm:$0xff] %v596
    // Predicated region
    $region46: #{tpu_custom_call.1} parent=1 // pred_check
      _
    $region47: #{tpu_custom_call.1} parent=1 // pred_check_branch
      %599 = sbr.rel (0) target = $region49
    $region48: #{tpu_custom_call.1} parent=1 // pred_region
      %s601 = ssub.s32 128, 128
      %602 = vsyncadd [#allocation4], %s601
      %s604 = sshll.u32 [#allocation8], 4
      %s605 = int_to_ptr.vmem [resolvable:$true] %s604
      %607 = dma.vmem_to_hbm [thread:$0]  %s605, 128, %s7, [#allocation4]
    $region49: #{tpu_custom_call.1} parent=1 // pred_fallthru
      _
    // Predicated region
    $region50: #{tpu_custom_call.1} parent=1 // pred_check
      _
    $region51: #{tpu_custom_call.1} parent=1 // pred_check_branch
      %609 = sbr.rel (0) target = $region53
    $region52: #{tpu_custom_call.1} parent=1 // pred_region
      %610 = dma.done [#allocation4], 128
    $region53: #{tpu_custom_call.1} parent=1 // pred_fallthru
      _
    %611 = vsyncpa [#allocation3], 1
    %612 = vsyncpa [#allocation6], 1
    %613 = vsyncpa [#allocation4], 1

// kernel: tpu_custom_call.1
$region0: #{tpu_custom_call.1}
  #allocation0 [shape = 'u32[]', space=smem, size = 0x4, offset = 0x4, fixed_abs, tag = 'smem constant byte address 0x4 - core index']
  #allocation1 [shape = 'u32[144,128]{1,0:T(1,128)}', space=vmem, size = 0x12000, scoped, tag = 'internal scratch']
  %s0 = inlined_call_operand.vmem [shape: s32[1,128], index: 0, kind: input, shape index: {}]
  %s1 = inlined_call_operand.vmem [shape: s32[8,1], index: 1, kind: input, shape index: {}]
  %s2 = inlined_call_operand.hbm [shape: bf16[128,128], index: 2, kind: input, shape index: {}]
  %s3 = inlined_call_operand.hbm [shape: bf16[128,128], index: 3, kind: input, shape index: {}]
  %s4 = inlined_call_operand.vmem [shape: f32[1,128], index: 4, kind: input, shape index: {}]
  %s5 = inlined_call_operand.hbm [shape: bf16[128,128], index: 5, kind: input, shape index: {}]
  %s6 = inlined_call_operand.vmem [shape: f32[1,128], index: 6, kind: input, shape index: {}]
  %s7 = inlined_call_operand.hbm [shape: f32[1,8,128], index: 7, kind: output, shape index: {}]
  %s8 = sld [smem:[#allocation0]]
  $region54: #{tpu_custom_call.1} parent=0
    _
  %s10 = ssub.s32 1, %s8
  %s11 = scalar_select 0, %s10, %s8
  $region1: #{tpu_custom_call.1} parent=0
    #allocation2 [shape = 'u8[32768]{0}', space=vmem, size = 0x8000, scoped, tag = 'input window, operand 2, single buffered']
    #allocation3 [shape = 's32[1]{0}', space=sflag, size = 0x4, scoped, tag = 'scoped memory for tpu_custom_call.1']
    #allocation4 [shape = 's32[1]{0}', space=sflag, size = 0x4, scoped, tag = 'scoped memory for tpu_custom_call.1']
    #allocation5 [shape = 'u8[32768]{0}', space=vmem, size = 0x8000, scoped, tag = 'input window, operand 3, single buffered']
    #allocation6 [shape = 's32[1]{0}', space=sflag, size = 0x4, scoped, tag = 'scoped memory for tpu_custom_call.1']
    #allocation7 [shape = 'u8[32768]{0}', space=vmem, size = 0x8000, scoped, tag = 'input window, operand 5, single buffered']
    #allocation8 [shape = 'u8[4096]{0}', space=vmem, size = 0x1000, scoped, tag = 'output window, operand 0, single buffered']
    %12 = vsyncpa [#allocation3], 0
    %13 = vsyncpa [#allocation6], 0
    %14 = vsyncpa [#allocation4], 0
    // Predicated region
    $region2: #{tpu_custom_call.1} parent=1 // pred_check
      _
    $region3: #{tpu_custom_call.1} parent=1 // pred_check_branch
      %16 = sbr.rel (0) target = $region5
    $region4: #{tpu_custom_call.1} parent=1 // pred_region
      %s17 = sadd.s32 0, 0
      %p18 = scmp.lt.s32.totalorder %s17, 0
      %s19 = scalar_select %p18, %s17, 0
      %s20 = scalar_lea.vmem %s0, %s19
      %s21 = sadd.s32 0, 0
    $region5: #{tpu_custom_call.1} parent=1 // pred_fallthru
      _
    // Predicated region
    $region6: #{tpu_custom_call.1} parent=1 // pred_check
      _
    $region7: #{tpu_custom_call.1} parent=1 // pred_check_branch
      %23 = sbr.rel (0) target = $region9
    $region8: #{tpu_custom_call.1} parent=1 // pred_region
      _
    $region9: #{tpu_custom_call.1} parent=1 // pred_fallthru
      _
    // Predicated region
    $region10: #{tpu_custom_call.1} parent=1 // pred_check
      _
    $region11: #{tpu_custom_call.1} parent=1 // pred_check_branch
      %25 = sbr.rel (0) target = $region13
    $region12: #{tpu_custom_call.1} parent=1 // pred_region
      %s26 = sadd.s32 0, 0
      %s27 = smul.u32 16, %s26
      %s29 = ssub.s32 1024, 1024
      %30 = vsyncadd [#allocation3], %s29
      %s31 = smul.addr %s27, 64
      %s32 = scalar_lea.hbm %s2, %s31
      %s33 = sshll.u32 [#allocation2], 4
      %s34 = int_to_ptr.vmem [resolvable:$true] %s33
      %39 = dma.hbm_to_vmem [thread:$0]  %s32, 1024, %s34, [#allocation3], 64, 64, 4
    $region13: #{tpu_custom_call.1} parent=1 // pred_fallthru
      _
    // Predicated region
    $region14: #{tpu_custom_call.1} parent=1 // pred_check
      _
    $region15: #{tpu_custom_call.1} parent=1 // pred_check_branch
      %41 = sbr.rel (0) target = $region17
    $region16: #{tpu_custom_call.1} parent=1 // pred_region
      %s43 = ssub.s32 1024, 1024
      %44 = vsyncadd [#allocation6], %s43
      %s45 = sshll.u32 [#allocation5], 4
      %s46 = int_to_ptr.vmem [resolvable:$true] %s45
      %51 = dma.hbm_to_vmem [thread:$0]  %s3, 1024, %s46, [#allocation6], 64, 64, 4
    $region17: #{tpu_custom_call.1} parent=1 // pred_fallthru
      _
    // Predicated region
    $region18: #{tpu_custom_call.1} parent=1 // pred_check
      _
    $region19: #{tpu_custom_call.1} parent=1 // pred_check_branch
      %53 = sbr.rel (0) target = $region21
    $region20: #{tpu_custom_call.1} parent=1 // pred_region
      _
    $region21: #{tpu_custom_call.1} parent=1 // pred_fallthru
      _
    // Predicated region
    $region22: #{tpu_custom_call.1} parent=1 // pred_check
      _
    $region23: #{tpu_custom_call.1} parent=1 // pred_check_branch
      %55 = sbr.rel (0) target = $region25
    $region24: #{tpu_custom_call.1} parent=1 // pred_region
      %s57 = ssub.s32 1024, 1024
      %58 = vsyncadd [#allocation6], %s57
      %s59 = sshll.u32 [#allocation7], 4
      %s60 = int_to_ptr.vmem [resolvable:$true] %s59
      %65 = dma.hbm_to_vmem [thread:$0]  %s5, 1024, %s60, [#allocation6], 64, 64, 4
    $region25: #{tpu_custom_call.1} parent=1 // pred_fallthru
      _
    // Predicated region
    $region26: #{tpu_custom_call.1} parent=1 // pred_check
      _
    $region27: #{tpu_custom_call.1} parent=1 // pred_check_branch
      %67 = sbr.rel (0) target = $region29
    $region28: #{tpu_custom_call.1} parent=1 // pred_region
      _
    $region29: #{tpu_custom_call.1} parent=1 // pred_fallthru
      _
    // Predicated region
    $region30: #{tpu_custom_call.1} parent=1 // pred_check
      _
    $region31: #{tpu_custom_call.1} parent=1 // pred_check_branch
      %69 = sbr.rel (0) target = $region33
    $region32: #{tpu_custom_call.1} parent=1 // pred_region
      %70 = dma.done [#allocation3], 1024
    $region33: #{tpu_custom_call.1} parent=1 // pred_fallthru
      _
    // Predicated region
    $region34: #{tpu_custom_call.1} parent=1 // pred_check
      _
    $region35: #{tpu_custom_call.1} parent=1 // pred_check_branch
      %72 = sbr.rel (0) target = $region37
    $region36: #{tpu_custom_call.1} parent=1 // pred_region
      %73 = dma.done [#allocation6], 1024
    $region37: #{tpu_custom_call.1} parent=1 // pred_fallthru
      _
    // Predicated region
    $region38: #{tpu_custom_call.1} parent=1 // pred_check
      _
    $region39: #{tpu_custom_call.1} parent=1 // pred_check_branch
      %75 = sbr.rel (0) target = $region41
    $region40: #{tpu_custom_call.1} parent=1 // pred_region
      %76 = dma.done [#allocation6], 1024
    $region41: #{tpu_custom_call.1} parent=1 // pred_fallthru
      _
    %s77 = sadd.s32 0, 0
    %p78 = scmp.lt.s32.totalorder %s77, 0
    %s79 = scalar_select %p78, %s77, 0
    %s80 = scalar_lea.vmem %s0, %s79
    %s81 = sadd.s32 0, 0
    %p82 = scmp.lt.s32.totalorder %s81, 0
    %s83 = scalar_select %p82, %s81, 0
    %s84 = scalar_lea.vmem %s0, %s83
    %s85 = sadd.s32 0, 0
    %s86 = sadd.s32 0, 0
    %s87 = smul.u32 16, %s86
    %p89 = scmp.eq.s32.totalorder 0, 0
    // Predicated region
    $region42: #{tpu_custom_call.1} parent=1 // pred_check
      %p90 = pneg %p89
    $region43: #{tpu_custom_call.1} parent=1 // pred_check_branch
      %92 = sbr.rel (%p90) target = $region45
    $region44: #{tpu_custom_call.1} parent=1 // pred_region
      %93 = vst [vmem:[#allocation8] sm:$0xff] 0.0
    $region45: #{tpu_custom_call.1} parent=1 // pred_fallthru
      _
    %v94 = vld [vmem:[#allocation2] sm:$0xf]
    %v95 = vld [vmem:[#allocation2 + $0x4] sm:$0xf]
    %v96 = vld [vmem:[#allocation2 + $0x8] sm:$0xf]
    %v97 = vld [vmem:[#allocation2 + $0xc] sm:$0xf]
    %v98 = vld [vmem:[#allocation2 + $0x10] sm:$0xf]
    %v99 = vld [vmem:[#allocation2 + $0x14] sm:$0xf]
    %v100 = vld [vmem:[#allocation2 + $0x18] sm:$0xf]
    %v101 = vld [vmem:[#allocation2 + $0x1c] sm:$0xf]
    %v102 = vld [vmem:[#allocation2 + $0x20] sm:$0xf]
    %v103 = vld [vmem:[#allocation2 + $0x24] sm:$0xf]
    %v104 = vld [vmem:[#allocation2 + $0x28] sm:$0xf]
    %v105 = vld [vmem:[#allocation2 + $0x2c] sm:$0xf]
    %v106 = vld [vmem:[#allocation2 + $0x30] sm:$0xf]
    %v107 = vld [vmem:[#allocation2 + $0x34] sm:$0xf]
    %v108 = vld [vmem:[#allocation2 + $0x38] sm:$0xf]
    %v109 = vld [vmem:[#allocation2 + $0x3c] sm:$0xf]
    %v110 = vld [vmem:[#allocation5] sm:$0xf]
    %v111 = vld [vmem:[#allocation5 + $0x4] sm:$0xf]
    %v112 = vld [vmem:[#allocation5 + $0x8] sm:$0xf]
    %v113 = vld [vmem:[#allocation5 + $0xc] sm:$0xf]
    %v114 = vld [vmem:[#allocation5 + $0x10] sm:$0xf]
    %v115 = vld [vmem:[#allocation5 + $0x14] sm:$0xf]
    %v116 = vld [vmem:[#allocation5 + $0x18] sm:$0xf]
    %v117 = vld [vmem:[#allocation5 + $0x1c] sm:$0xf]
    %v118 = vld [vmem:[#allocation5 + $0x20] sm:$0xf]
    %v119 = vld [vmem:[#allocation5 + $0x24] sm:$0xf]
    %v120 = vld [vmem:[#allocation5 + $0x28] sm:$0xf]
    %v121 = vld [vmem:[#allocation5 + $0x2c] sm:$0xf]
    %v122 = vld [vmem:[#allocation5 + $0x30] sm:$0xf]
    %v123 = vld [vmem:[#allocation5 + $0x34] sm:$0xf]
    %v124 = vld [vmem:[#allocation5 + $0x38] sm:$0xf]
    %v125 = vld [vmem:[#allocation5 + $0x3c] sm:$0xf]
    %v126 = vld [vmem:[%s4] sm:$0x1]
    %v128 = vlaneseq
    %v129 = vshrl.u32 %v128, 7
    %v130 = vsub.s32 0, %v129
    %v131 = vrot.slane %v126, %v130
    %v149 = vunpack.c.l.b16 %v94
    %v150 = vunpack.c.l.b16 %v95
    %v151 = vunpack.c.l.b16 %v96
    %v152 = vunpack.c.l.b16 %v97
    %v153 = vunpack.c.l.b16 %v98
    %v154 = vunpack.c.l.b16 %v99
    %v155 = vunpack.c.l.b16 %v100
    %v156 = vunpack.c.l.b16 %v101
    %v157 = vunpack.c.l.b16 %v102
    %v158 = vunpack.c.l.b16 %v103
    %v159 = vunpack.c.l.b16 %v104
    %v160 = vunpack.c.l.b16 %v105
    %v161 = vunpack.c.l.b16 %v106
    %v162 = vunpack.c.l.b16 %v107
    %v163 = vunpack.c.l.b16 %v108
    %v164 = vunpack.c.l.b16 %v109
    %v165 = vpack.c.b16 %v150, %v149
    %v166 = vpack.c.b16 %v152, %v151
    %v167 = vpack.c.b16 %v154, %v153
    %v168 = vpack.c.b16 %v156, %v155
    %v169 = vpack.c.b16 %v158, %v157
    %v170 = vpack.c.b16 %v160, %v159
    %v171 = vpack.c.b16 %v162, %v161
    %v172 = vpack.c.b16 %v164, %v163
    %v197 = vunpack.c.l.b16 %v110
    %v198 = vunpack.c.l.b16 %v111
    %v199 = vunpack.c.l.b16 %v112
    %v200 = vunpack.c.l.b16 %v113
    %v201 = vunpack.c.l.b16 %v114
    %v202 = vunpack.c.l.b16 %v115
    %v203 = vunpack.c.l.b16 %v116
    %v204 = vunpack.c.l.b16 %v117
    %v205 = vunpack.c.l.b16 %v118
    %v206 = vunpack.c.l.b16 %v119
    %v207 = vunpack.c.l.b16 %v120
    %v208 = vunpack.c.l.b16 %v121
    %v209 = vunpack.c.l.b16 %v122
    %v210 = vunpack.c.l.b16 %v123
    %v211 = vunpack.c.l.b16 %v124
    %v212 = vunpack.c.l.b16 %v125
    %v213 = vpack.c.b16 %v198, %v197
    %v214 = vpack.c.b16 %v200, %v199
    %v215 = vpack.c.b16 %v202, %v201
    %v216 = vpack.c.b16 %v204, %v203
    %v217 = vpack.c.b16 %v206, %v205
    %v218 = vpack.c.b16 %v208, %v207
    %v219 = vpack.c.b16 %v210, %v209
    %v220 = vpack.c.b16 %v212, %v211
    %229 = vmatprep.subr.bf16.mxu0 0
    %230 = vmatpush1.bf16.msra.mxu0 %v220
    %231 = vmatprep.subr.bf16.mxu0 0
    %232 = vmatpush1.bf16.msra.mxu0 %v219
    %233 = vmatprep.subr.bf16.mxu0 0
    %234 = vmatpush1.bf16.msra.mxu0 %v218
    %235 = vmatprep.subr.bf16.mxu0 0
    %236 = vmatpush1.bf16.msra.mxu0 %v217
    %237 = vmatprep.subr.bf16.mxu0 0
    %238 = vmatpush1.bf16.msra.mxu0 %v216
    %239 = vmatprep.subr.bf16.mxu0 0
    %240 = vmatpush1.bf16.msra.mxu0 %v215
    %241 = vmatprep.subr.bf16.mxu0 0
    %242 = vmatpush1.bf16.msra.mxu0 %v214
    %243 = vmatprep.subr.bf16.mxu0 0
    %244 = vmatpush1.bf16.msra.mxu0 %v213
    %245 = vmatprep.subr.bf16.mxu0 0
    %246 = vmatpush2.bf16.msra.mxu0 0
    %247 = vmatprep.subr.bf16.mxu0 0
    %248 = vmatpush2.bf16.msra.mxu0 0
    %249 = vmatprep.subr.bf16.mxu0 0
    %250 = vmatpush2.bf16.msra.mxu0 0
    %251 = vmatprep.subr.bf16.mxu0 0
    %252 = vmatpush2.bf16.msra.mxu0 0
    %253 = vmatprep.subr.bf16.mxu0 0
    %254 = vmatpush2.bf16.msra.mxu0 0
    %255 = vmatprep.subr.bf16.mxu0 0
    %256 = vmatpush2.bf16.msra.mxu0 0
    %257 = vmatprep.subr.bf16.mxu0 0
    %258 = vmatpush2.bf16.msra.mxu0 0
    %259 = vmatprep.subr.bf16.mxu0 0
    %260 = vmatpush2.bf16.msra.mxu0 0
    %261 = vmatprep.mubr.bf16.mxu0 0
    %262 = vmatmul.mubr.bf16.gmra.mxu0 %v165
    %v263 = vpop.f32.mrf.mxu0
    %v264 = vadd.f32 %v131, %v263
    %v265 = vpop.f32.mrf.mxu0
    %v266 = vpop.f32.mrf.mxu0
    %v267 = vadd.f32 %v131, %v266
    %v268 = vpop.f32.mrf.mxu0
    %269 = vmatprep.mubr.bf16.mxu0 0
    %270 = vmatmul.mubr.bf16.gmra.mxu0 %v166
    %v271 = vpop.f32.mrf.mxu0
    %v272 = vadd.f32 %v131, %v271
    %v273 = vpop.f32.mrf.mxu0
    %v274 = vpop.f32.mrf.mxu0
    %v275 = vadd.f32 %v131, %v274
    %v276 = vpop.f32.mrf.mxu0
    %277 = vmatprep.mubr.bf16.mxu0 0
    %278 = vmatmul.mubr.bf16.gmra.mxu0 %v167
    %v279 = vpop.f32.mrf.mxu0
    %v280 = vadd.f32 %v131, %v279
    %v281 = vpop.f32.mrf.mxu0
    %v282 = vpop.f32.mrf.mxu0
    %v283 = vadd.f32 %v131, %v282
    %v284 = vpop.f32.mrf.mxu0
    %285 = vmatprep.mubr.bf16.mxu0 0
    %286 = vmatmul.mubr.bf16.gmra.mxu0 %v168
    %v287 = vpop.f32.mrf.mxu0
    %v288 = vadd.f32 %v131, %v287
    %v289 = vpop.f32.mrf.mxu0
    %v290 = vpop.f32.mrf.mxu0
    %v291 = vadd.f32 %v131, %v290
    %v292 = vpop.f32.mrf.mxu0
    %293 = vmatprep.mubr.bf16.mxu0 0
    %294 = vmatmul.mubr.bf16.gmra.mxu0 %v169
    %v295 = vpop.f32.mrf.mxu0
    %v296 = vadd.f32 %v131, %v295
    %v297 = vpop.f32.mrf.mxu0
    %v298 = vpop.f32.mrf.mxu0
    %v299 = vadd.f32 %v131, %v298
    %v300 = vpop.f32.mrf.mxu0
    %301 = vmatprep.mubr.bf16.mxu0 0
    %302 = vmatmul.mubr.bf16.gmra.mxu0 %v170
    %v303 = vpop.f32.mrf.mxu0
    %v304 = vadd.f32 %v131, %v303
    %v305 = vpop.f32.mrf.mxu0
    %v306 = vpop.f32.mrf.mxu0
    %v307 = vadd.f32 %v131, %v306
    %v308 = vpop.f32.mrf.mxu0
    %309 = vmatprep.mubr.bf16.mxu0 0
    %310 = vmatmul.mubr.bf16.gmra.mxu0 %v171
    %v311 = vpop.f32.mrf.mxu0
    %v312 = vadd.f32 %v131, %v311
    %v313 = vpop.f32.mrf.mxu0
    %v314 = vpop.f32.mrf.mxu0
    %v315 = vadd.f32 %v131, %v314
    %v316 = vpop.f32.mrf.mxu0
    %317 = vmatprep.mubr.bf16.mxu0 0
    %318 = vmatmul.mubr.bf16.gmra.mxu0 %v172
    %v319 = vpop.f32.mrf.mxu0
    %v320 = vadd.f32 %v131, %v319
    %v321 = vpop.f32.mrf.mxu0
    %v322 = vpop.f32.mrf.mxu0
    %v323 = vadd.f32 %v131, %v322
    %v324 = vpop.f32.mrf.mxu0
    %325 = vdwg.mxu0
    %v326 = vmax.f32 %v264, 0.0
    %v327 = vmax.f32 %v267, 0.0
    %v328 = vmax.f32 %v272, 0.0
    %v329 = vmax.f32 %v275, 0.0
    %v330 = vmax.f32 %v280, 0.0
    %v331 = vmax.f32 %v283, 0.0
    %v332 = vmax.f32 %v288, 0.0
    %v333 = vmax.f32 %v291, 0.0
    %v334 = vmax.f32 %v296, 0.0
    %v335 = vmax.f32 %v299, 0.0
    %v336 = vmax.f32 %v304, 0.0
    %v337 = vmax.f32 %v307, 0.0
    %v338 = vmax.f32 %v312, 0.0
    %v339 = vmax.f32 %v315, 0.0
    %v340 = vmax.f32 %v320, 0.0
    %v341 = vmax.f32 %v323, 0.0
    %v342 = vpack.c.bf16 %v327, %v326
    %v343 = vpack.c.bf16 %v329, %v328
    %v344 = vpack.c.bf16 %v331, %v330
    %v345 = vpack.c.bf16 %v333, %v332
    %v346 = vpack.c.bf16 %v335, %v334
    %v347 = vpack.c.bf16 %v337, %v336
    %v348 = vpack.c.bf16 %v339, %v338
    %v349 = vpack.c.bf16 %v341, %v340
    %v350 = vld [vmem:[#allocation7] sm:$0xf]
    %v351 = vld [vmem:[#allocation7 + $0x4] sm:$0xf]
    %v352 = vld [vmem:[#allocation7 + $0x8] sm:$0xf]
    %v353 = vld [vmem:[#allocation7 + $0xc] sm:$0xf]
    %v354 = vld [vmem:[#allocation7 + $0x10] sm:$0xf]
    %v355 = vld [vmem:[#allocation7 + $0x14] sm:$0xf]
    %v356 = vld [vmem:[#allocation7 + $0x18] sm:$0xf]
    %v357 = vld [vmem:[#allocation7 + $0x1c] sm:$0xf]
    %v358 = vld [vmem:[#allocation7 + $0x20] sm:$0xf]
    %v359 = vld [vmem:[#allocation7 + $0x24] sm:$0xf]
    %v360 = vld [vmem:[#allocation7 + $0x28] sm:$0xf]
    %v361 = vld [vmem:[#allocation7 + $0x2c] sm:$0xf]
    %v362 = vld [vmem:[#allocation7 + $0x30] sm:$0xf]
    %v363 = vld [vmem:[#allocation7 + $0x34] sm:$0xf]
    %v364 = vld [vmem:[#allocation7 + $0x38] sm:$0xf]
    %v365 = vld [vmem:[#allocation7 + $0x3c] sm:$0xf]
    %v366 = vld [vmem:[%s6] sm:$0x1]
    %v368 = vlaneseq
    %v369 = vshrl.u32 %v368, 7
    %v370 = vsub.s32 0, %v369
    %v371 = vrot.slane %v366, %v370
    %v389 = vunpack.c.l.b16 %v350
    %v390 = vunpack.c.l.b16 %v351
    %v391 = vunpack.c.l.b16 %v352
    %v392 = vunpack.c.l.b16 %v353
    %v393 = vunpack.c.l.b16 %v354
    %v394 = vunpack.c.l.b16 %v355
    %v395 = vunpack.c.l.b16 %v356
    %v396 = vunpack.c.l.b16 %v357
    %v397 = vunpack.c.l.b16 %v358
    %v398 = vunpack.c.l.b16 %v359
    %v399 = vunpack.c.l.b16 %v360
    %v400 = vunpack.c.l.b16 %v361
    %v401 = vunpack.c.l.b16 %v362
    %v402 = vunpack.c.l.b16 %v363
    %v403 = vunpack.c.l.b16 %v364
    %v404 = vunpack.c.l.b16 %v365
    %v405 = vpack.c.b16 %v390, %v389
    %v406 = vpack.c.b16 %v392, %v391
    %v407 = vpack.c.b16 %v394, %v393
    %v408 = vpack.c.b16 %v396, %v395
    %v409 = vpack.c.b16 %v398, %v397
    %v410 = vpack.c.b16 %v400, %v399
    %v411 = vpack.c.b16 %v402, %v401
    %v412 = vpack.c.b16 %v404, %v403
    %421 = vmatprep.subr.bf16.mxu0 0
    %422 = vmatpush1.bf16.msra.mxu0 %v412
    %423 = vmatprep.subr.bf16.mxu0 0
    %424 = vmatpush1.bf16.msra.mxu0 %v411
    %425 = vmatprep.subr.bf16.mxu0 0
    %426 = vmatpush1.bf16.msra.mxu0 %v410
    %427 = vmatprep.subr.bf16.mxu0 0
    %428 = vmatpush1.bf16.msra.mxu0 %v409
    %429 = vmatprep.subr.bf16.mxu0 0
    %430 = vmatpush1.bf16.msra.mxu0 %v408
    %431 = vmatprep.subr.bf16.mxu0 0
    %432 = vmatpush1.bf16.msra.mxu0 %v407
    %433 = vmatprep.subr.bf16.mxu0 0
    %434 = vmatpush1.bf16.msra.mxu0 %v406
    %435 = vmatprep.subr.bf16.mxu0 0
    %436 = vmatpush1.bf16.msra.mxu0 %v405
    %437 = vmatprep.subr.bf16.mxu0 0
    %438 = vmatpush2.bf16.msra.mxu0 0
    %439 = vmatprep.subr.bf16.mxu0 0
    %440 = vmatpush2.bf16.msra.mxu0 0
    %441 = vmatprep.subr.bf16.mxu0 0
    %442 = vmatpush2.bf16.msra.mxu0 0
    %443 = vmatprep.subr.bf16.mxu0 0
    %444 = vmatpush2.bf16.msra.mxu0 0
    %445 = vmatprep.subr.bf16.mxu0 0
    %446 = vmatpush2.bf16.msra.mxu0 0
    %447 = vmatprep.subr.bf16.mxu0 0
    %448 = vmatpush2.bf16.msra.mxu0 0
    %449 = vmatprep.subr.bf16.mxu0 0
    %450 = vmatpush2.bf16.msra.mxu0 0
    %451 = vmatprep.subr.bf16.mxu0 0
    %452 = vmatpush2.bf16.msra.mxu0 0
    %453 = vmatprep.mubr.bf16.mxu0 0
    %454 = vmatmul.mubr.bf16.gmra.mxu0 %v342
    %v455 = vpop.f32.mrf.mxu0
    %v456 = vadd.f32 %v371, %v455
    %v457 = vpop.f32.mrf.mxu0
    %v458 = vpop.f32.mrf.mxu0
    %v459 = vadd.f32 %v371, %v458
    %v460 = vpop.f32.mrf.mxu0
    %461 = vmatprep.mubr.bf16.mxu0 0
    %462 = vmatmul.mubr.bf16.gmra.mxu0 %v343
    %v463 = vpop.f32.mrf.mxu0
    %v464 = vadd.f32 %v371, %v463
    %v465 = vpop.f32.mrf.mxu0
    %v466 = vpop.f32.mrf.mxu0
    %v467 = vadd.f32 %v371, %v466
    %v468 = vpop.f32.mrf.mxu0
    %469 = vmatprep.mubr.bf16.mxu0 0
    %470 = vmatmul.mubr.bf16.gmra.mxu0 %v344
    %v471 = vpop.f32.mrf.mxu0
    %v472 = vadd.f32 %v371, %v471
    %v473 = vpop.f32.mrf.mxu0
    %v474 = vpop.f32.mrf.mxu0
    %v475 = vadd.f32 %v371, %v474
    %v476 = vpop.f32.mrf.mxu0
    %477 = vmatprep.mubr.bf16.mxu0 0
    %478 = vmatmul.mubr.bf16.gmra.mxu0 %v345
    %v479 = vpop.f32.mrf.mxu0
    %v480 = vadd.f32 %v371, %v479
    %v481 = vpop.f32.mrf.mxu0
    %v482 = vpop.f32.mrf.mxu0
    %v483 = vadd.f32 %v371, %v482
    %v484 = vpop.f32.mrf.mxu0
    %485 = vmatprep.mubr.bf16.mxu0 0
    %486 = vmatmul.mubr.bf16.gmra.mxu0 %v346
    %v487 = vpop.f32.mrf.mxu0
    %v488 = vadd.f32 %v371, %v487
    %v489 = vpop.f32.mrf.mxu0
    %v490 = vpop.f32.mrf.mxu0
    %v491 = vadd.f32 %v371, %v490
    %v492 = vpop.f32.mrf.mxu0
    %493 = vmatprep.mubr.bf16.mxu0 0
    %494 = vmatmul.mubr.bf16.gmra.mxu0 %v347
    %v495 = vpop.f32.mrf.mxu0
    %v496 = vadd.f32 %v371, %v495
    %v497 = vpop.f32.mrf.mxu0
    %v498 = vpop.f32.mrf.mxu0
    %v499 = vadd.f32 %v371, %v498
    %v500 = vpop.f32.mrf.mxu0
    %501 = vmatprep.mubr.bf16.mxu0 0
    %502 = vmatmul.mubr.bf16.gmra.mxu0 %v348
    %v503 = vpop.f32.mrf.mxu0
    %v504 = vadd.f32 %v371, %v503
    %v505 = vpop.f32.mrf.mxu0
    %v506 = vpop.f32.mrf.mxu0
    %v507 = vadd.f32 %v371, %v506
    %v508 = vpop.f32.mrf.mxu0
    %509 = vmatprep.mubr.bf16.mxu0 0
    %510 = vmatmul.mubr.bf16.gmra.mxu0 %v349
    %v511 = vpop.f32.mrf.mxu0
    %v512 = vadd.f32 %v371, %v511
    %v513 = vpop.f32.mrf.mxu0
    %v514 = vpop.f32.mrf.mxu0
    %v515 = vadd.f32 %v371, %v514
    %v516 = vpop.f32.mrf.mxu0
    %517 = vdwg.mxu0
    %v518 = vmax.f32 %v456, 0.0
    %v519 = vmax.f32 %v459, 0.0
    %v520 = vmax.f32 %v464, 0.0
    %v521 = vmax.f32 %v467, 0.0
    %v522 = vmax.f32 %v472, 0.0
    %v523 = vmax.f32 %v475, 0.0
    %v524 = vmax.f32 %v480, 0.0
    %v525 = vmax.f32 %v483, 0.0
    %v526 = vmax.f32 %v488, 0.0
    %v527 = vmax.f32 %v491, 0.0
    %v528 = vmax.f32 %v496, 0.0
    %v529 = vmax.f32 %v499, 0.0
    %v530 = vmax.f32 %v504, 0.0
    %v531 = vmax.f32 %v507, 0.0
    %v532 = vmax.f32 %v512, 0.0
    %v533 = vmax.f32 %v515, 0.0
    %v534 = vld [vmem:[%s1] sm:$0xff]
    %v535 = vld [vmem:[%s84] sm:$0x1]
    %536 = vset.pattern.permute.xlu0 0
    %537 = vperm.xlu0 %536, %v534
    %v538 = vpop.permute.xlu0 %537
    %v539 = vlaneseq
    %v540 = vshrl.u32 %v539, 7
    %v541 = vsub.s32 0, %v540
    %v542 = vrot.slane %v535, %v541
    %vm543 = vcmp.eq.s32.totalorder %v538, %v542
    %v544 = vsel %vm543, 1, 0
    %v545 = vcvt.s32.f32 %v544
    %v546 = vpack.c.bf16 %v545, %v545
    %v547 = vld [vmem:[#allocation8] sm:$0xff]
    %v548 = vpack.c.bf16 %v519, %v518
    %v549 = vpack.c.bf16 %v521, %v520
    %v550 = vpack.c.bf16 %v523, %v522
    %v551 = vpack.c.bf16 %v525, %v524
    %v552 = vpack.c.bf16 %v527, %v526
    %v553 = vpack.c.bf16 %v529, %v528
    %v554 = vpack.c.bf16 %v531, %v530
    %v555 = vpack.c.bf16 %v533, %v532
    %556 = vmatprep.subr.bf16.mxu0 0
    %557 = vmatpush1.bf16.msra.mxu0 %v555
    %558 = vmatprep.subr.bf16.mxu0 0
    %559 = vmatpush1.bf16.msra.mxu0 %v554
    %560 = vmatprep.subr.bf16.mxu0 0
    %561 = vmatpush1.bf16.msra.mxu0 %v553
    %562 = vmatprep.subr.bf16.mxu0 0
    %563 = vmatpush1.bf16.msra.mxu0 %v552
    %564 = vmatprep.subr.bf16.mxu0 0
    %565 = vmatpush1.bf16.msra.mxu0 %v551
    %566 = vmatprep.subr.bf16.mxu0 0
    %567 = vmatpush1.bf16.msra.mxu0 %v550
    %568 = vmatprep.subr.bf16.mxu0 0
    %569 = vmatpush1.bf16.msra.mxu0 %v549
    %570 = vmatprep.subr.bf16.mxu0 0
    %571 = vmatpush1.bf16.msra.mxu0 %v548
    %572 = vmatprep.subr.bf16.mxu0 0
    %573 = vmatpush2.bf16.msra.mxu0 0
    %574 = vmatprep.subr.bf16.mxu0 0
    %575 = vmatpush2.bf16.msra.mxu0 0
    %576 = vmatprep.subr.bf16.mxu0 0
    %577 = vmatpush2.bf16.msra.mxu0 0
    %578 = vmatprep.subr.bf16.mxu0 0
    %579 = vmatpush2.bf16.msra.mxu0 0
    %580 = vmatprep.subr.bf16.mxu0 0
    %581 = vmatpush2.bf16.msra.mxu0 0
    %582 = vmatprep.subr.bf16.mxu0 0
    %583 = vmatpush2.bf16.msra.mxu0 0
    %584 = vmatprep.subr.bf16.mxu0 0
    %585 = vmatpush2.bf16.msra.mxu0 0
    %586 = vmatprep.subr.bf16.mxu0 0
    %587 = vmatpush2.bf16.msra.mxu0 0
    %588 = vmatprep.mubr.bf16.mxu0 0
    %589 = vmatmul.mubr.bf16.gmra.mxu0 %v546
    %v590 = vpop.f32.mrf.mxu0
    %v591 = vadd.f32 0.0, %v590
    %v592 = vpop.f32.mrf.mxu0
    %v593 = vpop.f32.mrf.mxu0
    %v594 = vpop.f32.mrf.mxu0
    %595 = vdwg.mxu0
    %v596 = vadd.f32 %v547, %v591
    %597 = vst [vmem:[#allocation8] sm:$0xff] %v596
    // Predicated region
    $region46: #{tpu_custom_call.1} parent=1 // pred_check
      _
    $region47: #{tpu_custom_call.1} parent=1 // pred_check_branch
      %599 = sbr.rel (0) target = $region49
    $region48: #{tpu_custom_call.1} parent=1 // pred_region
      %s601 = ssub.s32 128, 128
      %602 = vsyncadd [#allocation4], %s601
      %s604 = sshll.u32 [#allocation8], 4
      %s605 = int_to_ptr.vmem [resolvable:$true] %s604
      %607 = dma.vmem_to_hbm [thread:$0]  %s605, 128, %s7, [#allocation4]
    $region49: #{tpu_custom_call.1} parent=1 // pred_fallthru
      _
    // Predicated region
    $region50: #{tpu_custom_call.1} parent=1 // pred_check
      _
    $region51: #{tpu_custom_call.1} parent=1 // pred_check_branch
      %609 = sbr.rel (0) target = $region53
    $region52: #{tpu_custom_call.1} parent=1 // pred_region
      %610 = dma.done [#allocation4], 128
    $region53: #{tpu_custom_call.1} parent=1 // pred_fallthru
      _
    %611 = vsyncpa [#allocation3], 1
    %612 = vsyncpa [#allocation6], 1
    %613 = vsyncpa [#allocation4], 1

</llo_original>
